<compile_context>
chip_gen: v5e
topology: v5e:2x2
jax: 0.10.0
libtpu: 0.0.40
codegen_flags: <defaults>
</compile_context>

<pallas_src>
import functools

import jax
import jax.numpy as jnp
from jax import lax
from jax.experimental import pallas as pl
from jax.experimental.pallas import tpu as pltpu


# ------------------------------ fused kernel -------------------------------- #

def _bcif_fused_kernel(x1_ref, x2_ref, ua_ref, ub_ref, w_ref, b_ref, o_ref,
                       *, out_ch, W):
    """Full BCIF forward for one image.

    Layout: channels on sublanes, flattened pixels (H*W) on lanes.
      x*_ref : (1, KP, HW)      input channels zero-padded to KP
      w_ref  : (18, out_ch, KP) BN-folded, transposed, zero-padded weights
      b_ref  : (6, out_ch, 1)   BN-folded biases
      o_ref  : (1, out_ch, HW)
    """
    x1 = x1_ref[0]
    x2 = x2_ref[0]
    ua = ua_ref[0]
    ub = ub_ref[0]
    HW = x1.shape[-1]

    def mm(i, x, k=None):
        w = w_ref[i] if k is None else w_ref[i][:, :k]
        return jnp.dot(w, x, preferred_element_type=jnp.float32)

    def bias(i):
        return b_ref[i]                       # (out_ch, 1), broadcasts over lanes

    relu = lambda z: jnp.maximum(z, 0.0)

    # tp = ConvBNAct(cat([x1, x2], channel))          -> split weight, 2 dots
    tp = relu(mm(0, x1) + mm(1, x2) + bias(0))
    # t1 = ssm1(channel-interleave(x1, x2))           -> column-deinterleaved W
    t1 = relu(mm(2, x1) + mm(3, x2) + bias(1))
    # t2 = ssm2(width-interleave(x1, x2)) split into left/right width halves.
    # The (placeholder) ssm2 is pointwise, so it is applied to the pre-permuted
    # pixel streams ua/ub prepared (cheaply) in the wrapper.
    t2a = relu(mm(4, ua) + bias(2))
    t2b = relu(mm(4, ub) + bias(2))
    # cbr1(cat([t1, t2_left, t2_right], channel))     -> split weight, 3 dots
    t = relu(mm(5, t1, out_ch) + mm(6, t2a, out_ch) + mm(7, t2b, out_ch)
             + bias(3))
    # cbr2 (LKSSMBlock placeholder, 1x1)
    t = relu(mm(8, t, out_ch) + bias(4))

    # cbr3: 3x3 conv, padding=1, as 9 shifted dot-accumulations over the flat
    # pixel axis.  Zero fill handles the top/bottom border; width-boundary
    # masks handle the left/right border.
    w_coord = lax.broadcasted_iota(jnp.int32, (1, HW), 1) % W
    not_left = w_coord >= 1            # output columns with a valid w-1 source
    not_right = w_coord <= (W - 2)     # output columns with a valid w+1 source
    acc = jnp.zeros((out_ch, HW), jnp.float32)
    tap = 0
    for dh in (-1, 0, 1):
        for dw in (-1, 0, 1):
            s = dh * W + dw            # shifted[:, m] = t[:, m + s]
            if s > 0:
                sh = jnp.concatenate(
                    [t[:, s:], jnp.zeros((out_ch, s), jnp.float32)], axis=1)
            elif s < 0:
                sh = jnp.concatenate(
                    [jnp.zeros((out_ch, -s), jnp.float32), t[:, :s]], axis=1)
            else:
                sh = t
            if dw == -1:
                sh = jnp.where(not_left, sh, 0.0)
            elif dw == 1:
                sh = jnp.where(not_right, sh, 0.0)
            acc = acc + mm(9 + tap, sh, out_ch)
            tap += 1

    # BN + ReLU of cbr3, then residual add with tp (fused).
    o_ref[0] = relu(acc + bias(5)) + tp


# ------------------------------ parameters ---------------------------------- #

def make_cbna_params(key, cin, cout, ksize=1):
    """Deterministic synthetic params for one ConvBNAct (BN in inference mode).

    w layout: (ksize*ksize*cin, cout), rows ordered [dh][dw][cin]."""
    k1, k2 = jax.random.split(key)
    fan = cin * ksize * ksize
    w = jax.random.normal(k1, (ksize * ksize * cin, cout), jnp.float32) / jnp.sqrt(fan)
    b = jax.random.normal(k2, (cout,), jnp.float32) * 0.01
    eps = 1e-5
    gamma = jnp.ones((cout,), jnp.float32)
    beta = jnp.zeros((cout,), jnp.float32)
    running_mean = jnp.zeros((cout,), jnp.float32)
    running_var = jnp.ones((cout,), jnp.float32)
    scale = gamma / jnp.sqrt(running_var + eps)
    shift = beta - running_mean * scale
    return {"w": w, "b": b, "scale": scale, "shift": shift}


def make_bcif_params(seed, in_ch, out_ch, kernels_size=13):
    keys = jax.random.split(jax.random.PRNGKey(seed), 6)
    return {
        # TODO(synk): ssm1/ssm2 stand in for SS2D_v3 (definition not provided).
        "ssm1": make_cbna_params(keys[0], 2 * in_ch, out_ch, 1),
        "ssm2": make_cbna_params(keys[1], in_ch, out_ch, 1),
        "conv": make_cbna_params(keys[2], 2 * in_ch, out_ch, 1),
        "cbr1": make_cbna_params(keys[3], 3 * out_ch, out_ch, 1),
        # TODO(synk): cbr2 stands in for LKSSMBlock (definition not provided).
        "cbr2": make_cbna_params(keys[4], out_ch, out_ch, 1),
        "cbr3": make_cbna_params(keys[5], out_ch, out_ch, 3),
    }


def _fold_wt(p):
    """(K, Cout) conv weight + inference BN -> folded, transposed (Cout, K)."""
    return (p["w"] * p["scale"][None, :]).T.astype(jnp.float32)


def _fold_bias(p):
    return (p["b"] * p["scale"] + p["shift"]).astype(jnp.float32).reshape(-1, 1)


# ------------------------------ BCIF forward --------------------------------- #

@jax.jit
def bcif_forward(params, x1_nchw, x2_nchw):
    x1 = x1_nchw.astype(jnp.float32)
    x2 = x2_nchw.astype(jnp.float32)
    B, C, H, W = x1.shape
    out_ch = params["cbr2"]["w"].shape[1]
    HW = H * W
    assert W % 2 == 0, "width-interleave/split fold below assumes even W"
    # TODO(synk): odd W would need a parity-flipped gather for the right half.

    KP = -(-max(C, out_ch) // 8) * 8          # padded contraction dim (sublanes)

    # ssm2's input is a width-interleave of x1/x2.  Because the (placeholder)
    # ssm2 is pointwise, pre-permute only the small raw inputs here so the
    # kernel stays pointwise in the pixel index:
    #   left half of interleaved width -> ua,  right half -> ub.
    half = W // 2
    ua = jnp.stack([x1[..., :half], x2[..., :half]], axis=-1).reshape(B, C, H, W)
    ub = jnp.stack([x1[..., half:], x2[..., half:]], axis=-1).reshape(B, C, H, W)

    def prep(x):  # NCHW -> (B, KP, H*W), channels zero-padded to KP
        x = x.reshape(B, C, HW)
        return jnp.pad(x, ((0, 0), (0, KP - C), (0, 0)))

    x1p, x2p, uap, ubp = prep(x1), prep(x2), prep(ua), prep(ub)

    def padk(w):  # (out_ch, k) -> (out_ch, KP)
        return jnp.pad(w, ((0, 0), (0, KP - w.shape[1])))

    wc = _fold_wt(params["conv"])     # (out_ch, 2C)
    ws1 = _fold_wt(params["ssm1"])    # (out_ch, 2C)
    ws2 = _fold_wt(params["ssm2"])    # (out_ch, C)
    w1 = _fold_wt(params["cbr1"])     # (out_ch, 3*out_ch)
    w2 = _fold_wt(params["cbr2"])     # (out_ch, out_ch)
    w3 = _fold_wt(params["cbr3"])     # (out_ch, 9*out_ch)
    blocks = [
        padk(wc[:, :C]), padk(wc[:, C:]),            # conv: channel-cat -> split
        padk(ws1[:, 0::2]), padk(ws1[:, 1::2]),      # ssm1: channel-interleave fold
        padk(ws2),                                   # ssm2
        padk(w1[:, :out_ch]), padk(w1[:, out_ch:2 * out_ch]),
        padk(w1[:, 2 * out_ch:]),                    # cbr1: channel-cat -> split
        padk(w2),                                    # cbr2
    ] + [padk(w3[:, k * out_ch:(k + 1) * out_ch]) for k in range(9)]  # cbr3 taps
    wstack = jnp.stack(blocks)                       # (18, out_ch, KP)
    bstack = jnp.stack([_fold_bias(params[k])
                        for k in ("conv", "ssm1", "ssm2", "cbr1", "cbr2", "cbr3")])

    act_spec = pl.BlockSpec((1, KP, HW), lambda b: (b, 0, 0))
    out = pl.pallas_call(
        functools.partial(_bcif_fused_kernel, out_ch=out_ch, W=W),
        out_shape=jax.ShapeDtypeStruct((B, out_ch, HW), jnp.float32),
        grid=(B,),
        in_specs=[act_spec, act_spec, act_spec, act_spec,
                  pl.BlockSpec(wstack.shape, lambda b: (0, 0, 0)),
                  pl.BlockSpec(bstack.shape, lambda b: (0, 0, 0))],
        out_specs=pl.BlockSpec((1, out_ch, HW), lambda b: (b, 0, 0)),
        compiler_params=pltpu.CompilerParams(
            dimension_semantics=("parallel",)),
    )(x1p, x2p, uap, ubp, wstack, bstack)

    return out.reshape(B, out_ch, H, W)


# ------------------------- pure-JAX reference (check) ------------------------ #

def _ref_pointwise(x_nchw, p):
    B, C, H, W = x_nchw.shape
    x2d = jnp.transpose(x_nchw, (0, 2, 3, 1)).reshape(-1, C)
    y = (x2d @ p["w"] + p["b"]) * p["scale"] + p["shift"]
    y = jnp.maximum(y, 0.0)
    return jnp.transpose(y.reshape(B, H, W, -1), (0, 3, 1, 2))


def bcif_reference(params, x1, x2):
    """Straightforward jnp port of the PyTorch forward (same placeholders)."""
    B, C, H, W = x1.shape
    tp = _ref_pointwise(jnp.concatenate([x1, x2], axis=1), params["conv"])
    t1_in = jnp.stack([x1, x2], axis=2).reshape(B, 2 * C, H, W)   # ch interleave
    t1 = _ref_pointwise(t1_in, params["ssm1"])
    t2_in = jnp.stack([x1, x2], axis=-1).reshape(B, C, H, 2 * W)  # w interleave
    t2 = _ref_pointwise(t2_in, params["ssm2"])
    t = jnp.concatenate([t1, t2[:, :, :, :W], t2[:, :, :, W:]], axis=1)
    t = _ref_pointwise(t, params["cbr1"])
    t = _ref_pointwise(t, params["cbr2"])
    xp = jnp.pad(t, ((0, 0), (0, 0), (1, 1), (1, 1)))
    pats = jnp.concatenate(
        [xp[:, :, dh:dh + H, dw:dw + W] for dh in range(3) for dw in range(3)],
        axis=1)
    t = _ref_pointwise(pats, params["cbr3"])
    return t + tp


# ---------------------------------- main ------------------------------------ #

if __name__ == "__main__":
    B, in_ch, out_ch, H, W = 2, 4, 8, 16, 16

    key = jax.random.PRNGKey(0)
    k1, k2 = jax.random.split(key)
    x1 = jax.random.normal(k1, (B, in_ch, H, W), jnp.float32)   # NCHW like PyTorch
    x2 = jax.random.normal(k2, (B, in_ch, H, W), jnp.float32)

    params = make_bcif_params(seed=42, in_ch=in_ch, out_ch=out_ch, kernels_size=13)

    out = bcif_forward(params, x1, x2)
    out = jax.block_until_ready(out)
    assert out.shape == (B, out_ch, H, W), out.shape
    assert jnp.all(jnp.isfinite(out))

    ref = bcif_reference(params, x1, x2)
    assert jnp.allclose(out, ref, rtol=1e-4, atol=1e-4), \
        float(jnp.max(jnp.abs(out - ref)))
    print("KERNEL_OK")
</pallas_src>

<mosaic_0001>
module attributes {stable_mosaic.version = 11 : i64} {
  func.func @_bcif_fused_kernel(%arg0: i32, %arg1: memref<1x8x256xf32, #tpu.memory_space<vmem>>, %arg2: memref<1x8x256xf32, #tpu.memory_space<vmem>>, %arg3: memref<1x8x256xf32, #tpu.memory_space<vmem>>, %arg4: memref<1x8x256xf32, #tpu.memory_space<vmem>>, %arg5: memref<18x8x8xf32, #tpu.memory_space<vmem>>, %arg6: memref<6x8x1xf32, #tpu.memory_space<vmem>>, %arg7: memref<1x8x256xf32, #tpu.memory_space<vmem>>) attributes {dimension_semantics = [#tpu.dimension_semantics<parallel>], iteration_bounds = array<i64: 2>, scalar_prefetch = 0 : i64, scratch_operands = 0 : i64, tpu.core_type = #tpu.core_type<tc>, window_params = [{transform_indices = @transform_0, window_bounds = array<i64: 1, 8, 256>}, {transform_indices = @transform_1, window_bounds = array<i64: 1, 8, 256>}, {transform_indices = @transform_2, window_bounds = array<i64: 1, 8, 256>}, {transform_indices = @transform_3, window_bounds = array<i64: 1, 8, 256>}, {pipeline_mode = #tpu.pipeline_mode<synchronous>, transform_indices = @transform_4, window_bounds = array<i64: 18, 8, 8>}, {pipeline_mode = #tpu.pipeline_mode<synchronous>, transform_indices = @transform_5, window_bounds = array<i64: 6, 8, 1>}, {transform_indices = @transform_6, window_bounds = array<i64: 1, 8, 256>}]} {
    %c0 = arith.constant 0 : index
    %c0_0 = arith.constant 0 : index
    %c0_1 = arith.constant 0 : index
    %0 = vector.load %arg1[%c0, %c0_0, %c0_1] : memref<1x8x256xf32, #tpu.memory_space<vmem>>, vector<1x8x256xf32>
    %1 = vector.shape_cast %0 : vector<1x8x256xf32> to vector<8x256xf32>
    %c0_2 = arith.constant 0 : index
    %c0_3 = arith.constant 0 : index
    %c0_4 = arith.constant 0 : index
    %2 = vector.load %arg2[%c0_2, %c0_3, %c0_4] : memref<1x8x256xf32, #tpu.memory_space<vmem>>, vector<1x8x256xf32>
    %3 = vector.shape_cast %2 : vector<1x8x256xf32> to vector<8x256xf32>
    %c0_5 = arith.constant 0 : index
    %c0_6 = arith.constant 0 : index
    %c0_7 = arith.constant 0 : index
    %4 = vector.load %arg3[%c0_5, %c0_6, %c0_7] : memref<1x8x256xf32, #tpu.memory_space<vmem>>, vector<1x8x256xf32>
    %5 = vector.shape_cast %4 : vector<1x8x256xf32> to vector<8x256xf32>
    %c0_8 = arith.constant 0 : index
    %c0_9 = arith.constant 0 : index
    %c0_10 = arith.constant 0 : index
    %6 = vector.load %arg4[%c0_8, %c0_9, %c0_10] : memref<1x8x256xf32, #tpu.memory_space<vmem>>, vector<1x8x256xf32>
    %7 = vector.shape_cast %6 : vector<1x8x256xf32> to vector<8x256xf32>
    %c0_11 = arith.constant 0 : index
    %c0_12 = arith.constant 0 : index
    %c0_13 = arith.constant 0 : index
    %8 = vector.load %arg5[%c0_11, %c0_12, %c0_13] : memref<18x8x8xf32, #tpu.memory_space<vmem>>, vector<1x8x8xf32>
    %9 = vector.shape_cast %8 : vector<1x8x8xf32> to vector<8x8xf32>
    %cst = arith.constant dense<0.000000e+00> : vector<8x256xf32>
    %10 = tpu.matmul %9, %1, %cst {dimension_numbers = #tpu.dot_dimension_numbers<[1], [0], [0], [1], [0, 0, 1, 1], [], []>} : vector<8x8xf32>, vector<8x256xf32>, vector<8x256xf32> -> vector<8x256xf32>
    %c1 = arith.constant 1 : index
    %c0_14 = arith.constant 0 : index
    %c0_15 = arith.constant 0 : index
    %11 = vector.load %arg5[%c1, %c0_14, %c0_15] : memref<18x8x8xf32, #tpu.memory_space<vmem>>, vector<1x8x8xf32>
    %12 = vector.shape_cast %11 : vector<1x8x8xf32> to vector<8x8xf32>
    %cst_16 = arith.constant dense<0.000000e+00> : vector<8x256xf32>
    %13 = tpu.matmul %12, %3, %cst_16 {dimension_numbers = #tpu.dot_dimension_numbers<[1], [0], [0], [1], [0, 0, 1, 1], [], []>} : vector<8x8xf32>, vector<8x256xf32>, vector<8x256xf32> -> vector<8x256xf32>
    %14 = arith.addf %10, %13 : vector<8x256xf32>
    %c0_17 = arith.constant 0 : index
    %c0_18 = arith.constant 0 : index
    %c0_19 = arith.constant 0 : index
    %15 = vector.load %arg6[%c0_17, %c0_18, %c0_19] : memref<6x8x1xf32, #tpu.memory_space<vmem>>, vector<1x8x1xf32>
    %16 = vector.shape_cast %15 : vector<1x8x1xf32> to vector<8x1xf32>
    %17 = vector.broadcast %16 : vector<8x1xf32> to vector<8x256xf32>
    %18 = arith.addf %14, %17 : vector<8x256xf32>
    %cst_20 = arith.constant 0.000000e+00 : f32
    %19 = vector.broadcast %cst_20 : f32 to vector<8x256xf32>
    %20 = arith.maximumf %18, %19 : vector<8x256xf32>
    %c2 = arith.constant 2 : index
    %c0_21 = arith.constant 0 : index
    %c0_22 = arith.constant 0 : index
    %21 = vector.load %arg5[%c2, %c0_21, %c0_22] : memref<18x8x8xf32, #tpu.memory_space<vmem>>, vector<1x8x8xf32>
    %22 = vector.shape_cast %21 : vector<1x8x8xf32> to vector<8x8xf32>
    %cst_23 = arith.constant dense<0.000000e+00> : vector<8x256xf32>
    %23 = tpu.matmul %22, %1, %cst_23 {dimension_numbers = #tpu.dot_dimension_numbers<[1], [0], [0], [1], [0, 0, 1, 1], [], []>} : vector<8x8xf32>, vector<8x256xf32>, vector<8x256xf32> -> vector<8x256xf32>
    %c3 = arith.constant 3 : index
    %c0_24 = arith.constant 0 : index
    %c0_25 = arith.constant 0 : index
    %24 = vector.load %arg5[%c3, %c0_24, %c0_25] : memref<18x8x8xf32, #tpu.memory_space<vmem>>, vector<1x8x8xf32>
    %25 = vector.shape_cast %24 : vector<1x8x8xf32> to vector<8x8xf32>
    %cst_26 = arith.constant dense<0.000000e+00> : vector<8x256xf32>
    %26 = tpu.matmul %25, %3, %cst_26 {dimension_numbers = #tpu.dot_dimension_numbers<[1], [0], [0], [1], [0, 0, 1, 1], [], []>} : vector<8x8xf32>, vector<8x256xf32>, vector<8x256xf32> -> vector<8x256xf32>
    %27 = arith.addf %23, %26 : vector<8x256xf32>
    %c1_27 = arith.constant 1 : index
    %c0_28 = arith.constant 0 : index
    %c0_29 = arith.constant 0 : index
    %28 = vector.load %arg6[%c1_27, %c0_28, %c0_29] : memref<6x8x1xf32, #tpu.memory_space<vmem>>, vector<1x8x1xf32>
    %29 = vector.shape_cast %28 : vector<1x8x1xf32> to vector<8x1xf32>
    %30 = vector.broadcast %29 : vector<8x1xf32> to vector<8x256xf32>
    %31 = arith.addf %27, %30 : vector<8x256xf32>
    %cst_30 = arith.constant 0.000000e+00 : f32
    %32 = vector.broadcast %cst_30 : f32 to vector<8x256xf32>
    %33 = arith.maximumf %31, %32 : vector<8x256xf32>
    %c4 = arith.constant 4 : index
    %c0_31 = arith.constant 0 : index
    %c0_32 = arith.constant 0 : index
    %34 = vector.load %arg5[%c4, %c0_31, %c0_32] : memref<18x8x8xf32, #tpu.memory_space<vmem>>, vector<1x8x8xf32>
    %35 = vector.shape_cast %34 : vector<1x8x8xf32> to vector<8x8xf32>
    %cst_33 = arith.constant dense<0.000000e+00> : vector<8x256xf32>
    %36 = tpu.matmul %35, %5, %cst_33 {dimension_numbers = #tpu.dot_dimension_numbers<[1], [0], [0], [1], [0, 0, 1, 1], [], []>} : vector<8x8xf32>, vector<8x256xf32>, vector<8x256xf32> -> vector<8x256xf32>
    %c2_34 = arith.constant 2 : index
    %c0_35 = arith.constant 0 : index
    %c0_36 = arith.constant 0 : index
    %37 = vector.load %arg6[%c2_34, %c0_35, %c0_36] : memref<6x8x1xf32, #tpu.memory_space<vmem>>, vector<1x8x1xf32>
    %38 = vector.shape_cast %37 : vector<1x8x1xf32> to vector<8x1xf32>
    %39 = vector.broadcast %38 : vector<8x1xf32> to vector<8x256xf32>
    %40 = arith.addf %36, %39 : vector<8x256xf32>
    %cst_37 = arith.constant 0.000000e+00 : f32
    %41 = vector.broadcast %cst_37 : f32 to vector<8x256xf32>
    %42 = arith.maximumf %40, %41 : vector<8x256xf32>
    %c4_38 = arith.constant 4 : index
    %c0_39 = arith.constant 0 : index
    %c0_40 = arith.constant 0 : index
    %43 = vector.load %arg5[%c4_38, %c0_39, %c0_40] : memref<18x8x8xf32, #tpu.memory_space<vmem>>, vector<1x8x8xf32>
    %44 = vector.shape_cast %43 : vector<1x8x8xf32> to vector<8x8xf32>
    %cst_41 = arith.constant dense<0.000000e+00> : vector<8x256xf32>
    %45 = tpu.matmul %44, %7, %cst_41 {dimension_numbers = #tpu.dot_dimension_numbers<[1], [0], [0], [1], [0, 0, 1, 1], [], []>} : vector<8x8xf32>, vector<8x256xf32>, vector<8x256xf32> -> vector<8x256xf32>
    %c2_42 = arith.constant 2 : index
    %c0_43 = arith.constant 0 : index
    %c0_44 = arith.constant 0 : index
    %46 = vector.load %arg6[%c2_42, %c0_43, %c0_44] : memref<6x8x1xf32, #tpu.memory_space<vmem>>, vector<1x8x1xf32>
    %47 = vector.shape_cast %46 : vector<1x8x1xf32> to vector<8x1xf32>
    %48 = vector.broadcast %47 : vector<8x1xf32> to vector<8x256xf32>
    %49 = arith.addf %45, %48 : vector<8x256xf32>
    %cst_45 = arith.constant 0.000000e+00 : f32
    %50 = vector.broadcast %cst_45 : f32 to vector<8x256xf32>
    %51 = arith.maximumf %49, %50 : vector<8x256xf32>
    %c5 = arith.constant 5 : index
    %c0_46 = arith.constant 0 : index
    %c0_47 = arith.constant 0 : index
    %52 = vector.load %arg5[%c5, %c0_46, %c0_47] : memref<18x8x8xf32, #tpu.memory_space<vmem>>, vector<1x8x8xf32>
    %53 = vector.shape_cast %52 : vector<1x8x8xf32> to vector<8x8xf32>
    %cst_48 = arith.constant dense<0.000000e+00> : vector<8x256xf32>
    %54 = tpu.matmul %53, %33, %cst_48 {dimension_numbers = #tpu.dot_dimension_numbers<[1], [0], [0], [1], [0, 0, 1, 1], [], []>} : vector<8x8xf32>, vector<8x256xf32>, vector<8x256xf32> -> vector<8x256xf32>
    %c6 = arith.constant 6 : index
    %c0_49 = arith.constant 0 : index
    %c0_50 = arith.constant 0 : index
    %55 = vector.load %arg5[%c6, %c0_49, %c0_50] : memref<18x8x8xf32, #tpu.memory_space<vmem>>, vector<1x8x8xf32>
    %56 = vector.shape_cast %55 : vector<1x8x8xf32> to vector<8x8xf32>
    %cst_51 = arith.constant dense<0.000000e+00> : vector<8x256xf32>
    %57 = tpu.matmul %56, %42, %cst_51 {dimension_numbers = #tpu.dot_dimension_numbers<[1], [0], [0], [1], [0, 0, 1, 1], [], []>} : vector<8x8xf32>, vector<8x256xf32>, vector<8x256xf32> -> vector<8x256xf32>
    %58 = arith.addf %54, %57 : vector<8x256xf32>
    %c7 = arith.constant 7 : index
    %c0_52 = arith.constant 0 : index
    %c0_53 = arith.constant 0 : index
    %59 = vector.load %arg5[%c7, %c0_52, %c0_53] : memref<18x8x8xf32, #tpu.memory_space<vmem>>, vector<1x8x8xf32>
    %60 = vector.shape_cast %59 : vector<1x8x8xf32> to vector<8x8xf32>
    %cst_54 = arith.constant dense<0.000000e+00> : vector<8x256xf32>
    %61 = tpu.matmul %60, %51, %cst_54 {dimension_numbers = #tpu.dot_dimension_numbers<[1], [0], [0], [1], [0, 0, 1, 1], [], []>} : vector<8x8xf32>, vector<8x256xf32>, vector<8x256xf32> -> vector<8x256xf32>
    %62 = arith.addf %58, %61 : vector<8x256xf32>
    %c3_55 = arith.constant 3 : index
    %c0_56 = arith.constant 0 : index
    %c0_57 = arith.constant 0 : index
    %63 = vector.load %arg6[%c3_55, %c0_56, %c0_57] : memref<6x8x1xf32, #tpu.memory_space<vmem>>, vector<1x8x1xf32>
    %64 = vector.shape_cast %63 : vector<1x8x1xf32> to vector<8x1xf32>
    %65 = vector.broadcast %64 : vector<8x1xf32> to vector<8x256xf32>
    %66 = arith.addf %62, %65 : vector<8x256xf32>
    %cst_58 = arith.constant 0.000000e+00 : f32
    %67 = vector.broadcast %cst_58 : f32 to vector<8x256xf32>
    %68 = arith.maximumf %66, %67 : vector<8x256xf32>
    %c8 = arith.constant 8 : index
    %c0_59 = arith.constant 0 : index
    %c0_60 = arith.constant 0 : index
    %69 = vector.load %arg5[%c8, %c0_59, %c0_60] : memref<18x8x8xf32, #tpu.memory_space<vmem>>, vector<1x8x8xf32>
    %70 = vector.shape_cast %69 : vector<1x8x8xf32> to vector<8x8xf32>
    %cst_61 = arith.constant dense<0.000000e+00> : vector<8x256xf32>
    %71 = tpu.matmul %70, %68, %cst_61 {dimension_numbers = #tpu.dot_dimension_numbers<[1], [0], [0], [1], [0, 0, 1, 1], [], []>} : vector<8x8xf32>, vector<8x256xf32>, vector<8x256xf32> -> vector<8x256xf32>
    %c4_62 = arith.constant 4 : index
    %c0_63 = arith.constant 0 : index
    %c0_64 = arith.constant 0 : index
    %72 = vector.load %arg6[%c4_62, %c0_63, %c0_64] : memref<6x8x1xf32, #tpu.memory_space<vmem>>, vector<1x8x1xf32>
    %73 = vector.shape_cast %72 : vector<1x8x1xf32> to vector<8x1xf32>
    %74 = vector.broadcast %73 : vector<8x1xf32> to vector<8x256xf32>
    %75 = arith.addf %71, %74 : vector<8x256xf32>
    %cst_65 = arith.constant 0.000000e+00 : f32
    %76 = vector.broadcast %cst_65 : f32 to vector<8x256xf32>
    %77 = arith.maximumf %75, %76 : vector<8x256xf32>
    %78 = tpu.iota {dimensions = array<i32: 1>} : vector<1x256xi32>
    %c16_i32 = arith.constant 16 : i32
    %c0_i32 = arith.constant 0 : i32
    %79 = arith.cmpi eq, %c16_i32, %c0_i32 : i32
    %c1_i32 = arith.constant 1 : i32
    %80 = arith.select %79, %c1_i32, %c16_i32 : i32
    %81 = vector.broadcast %80 : i32 to vector<1x256xi32>
    %82 = arith.remsi %78, %81 : vector<1x256xi32>
    %c0_i32_66 = arith.constant 0 : i32
    %83 = vector.broadcast %c0_i32_66 : i32 to vector<1x256xi32>
    %84 = arith.cmpi ne, %82, %83 : vector<1x256xi32>
    %c0_i32_67 = arith.constant 0 : i32
    %85 = vector.broadcast %c0_i32_67 : i32 to vector<1x256xi32>
    %86 = arith.cmpi slt, %82, %85 : vector<1x256xi32>
    %c0_i32_68 = arith.constant 0 : i32
    %87 = arith.cmpi slt, %80, %c0_i32_68 : i32
    %88 = vector.broadcast %87 : i1 to vector<1x256xi1>
    %89 = vector.broadcast %88 : vector<1x256xi1> to vector<1x256xi1>
    %90 = arith.xori %86, %89 : vector<1x256xi1>
    %91 = arith.andi %90, %84 : vector<1x256xi1>
    %92 = vector.broadcast %80 : i32 to vector<1x256xi32>
    %93 = arith.addi %82, %92 : vector<1x256xi32>
    %94 = arith.select %91, %93, %82 : vector<1x256xi1>, vector<1x256xi32>
    %c1_i32_69 = arith.constant 1 : i32
    %95 = vector.broadcast %c1_i32_69 : i32 to vector<1x256xi32>
    %96 = arith.cmpi sge, %94, %95 : vector<1x256xi32>
    %c14_i32 = arith.constant 14 : i32
    %97 = vector.broadcast %c14_i32 : i32 to vector<1x256xi32>
    %98 = arith.cmpi sle, %94, %97 : vector<1x256xi32>
    %cst_70 = arith.constant 0.000000e+00 : f32
    %99 = vector.broadcast %cst_70 : f32 to vector<8x256xf32>
    %cst_71 = arith.constant 0.000000e+00 : f32
    %100 = vector.broadcast %cst_71 : f32 to vector<8x17xf32>
    %101 = vector.extract_strided_slice %77 {offsets = [0, 0], sizes = [8, 239], strides = [1, 1]} : vector<8x256xf32> to vector<8x239xf32>
    %102 = tpu.concatenate %100, %101 in 1 : vector<8x17xf32>, vector<8x239xf32> -> vector<8x256xf32>
    %cst_72 = arith.constant 0.000000e+00 : f32
    %103 = vector.shape_cast %96 : vector<1x256xi1> to vector<1x256xi1>
    %104 = vector.broadcast %103 : vector<1x256xi1> to vector<8x256xi1>
    %105 = vector.broadcast %cst_72 : f32 to vector<8x256xf32>
    %106 = arith.select %104, %102, %105 : vector<8x256xi1>, vector<8x256xf32>
    %c9 = arith.constant 9 : index
    %c0_73 = arith.constant 0 : index
    %c0_74 = arith.constant 0 : index
    %107 = vector.load %arg5[%c9, %c0_73, %c0_74] : memref<18x8x8xf32, #tpu.memory_space<vmem>>, vector<1x8x8xf32>
    %108 = vector.shape_cast %107 : vector<1x8x8xf32> to vector<8x8xf32>
    %cst_75 = arith.constant dense<0.000000e+00> : vector<8x256xf32>
    %109 = tpu.matmul %108, %106, %cst_75 {dimension_numbers = #tpu.dot_dimension_numbers<[1], [0], [0], [1], [0, 0, 1, 1], [], []>} : vector<8x8xf32>, vector<8x256xf32>, vector<8x256xf32> -> vector<8x256xf32>
    %110 = arith.addf %99, %109 : vector<8x256xf32>
    %cst_76 = arith.constant 0.000000e+00 : f32
    %111 = vector.broadcast %cst_76 : f32 to vector<8x16xf32>
    %112 = vector.extract_strided_slice %77 {offsets = [0, 0], sizes = [8, 240], strides = [1, 1]} : vector<8x256xf32> to vector<8x240xf32>
    %113 = tpu.concatenate %111, %112 in 1 : vector<8x16xf32>, vector<8x240xf32> -> vector<8x256xf32>
    %c10 = arith.constant 10 : index
    %c0_77 = arith.constant 0 : index
    %c0_78 = arith.constant 0 : index
    %114 = vector.load %arg5[%c10, %c0_77, %c0_78] : memref<18x8x8xf32, #tpu.memory_space<vmem>>, vector<1x8x8xf32>
    %115 = vector.shape_cast %114 : vector<1x8x8xf32> to vector<8x8xf32>
    %cst_79 = arith.constant dense<0.000000e+00> : vector<8x256xf32>
    %116 = tpu.matmul %115, %113, %cst_79 {dimension_numbers = #tpu.dot_dimension_numbers<[1], [0], [0], [1], [0, 0, 1, 1], [], []>} : vector<8x8xf32>, vector<8x256xf32>, vector<8x256xf32> -> vector<8x256xf32>
    %117 = arith.addf %110, %116 : vector<8x256xf32>
    %cst_80 = arith.constant 0.000000e+00 : f32
    %118 = vector.broadcast %cst_80 : f32 to vector<8x15xf32>
    %119 = vector.extract_strided_slice %77 {offsets = [0, 0], sizes = [8, 241], strides = [1, 1]} : vector<8x256xf32> to vector<8x241xf32>
    %120 = tpu.concatenate %118, %119 in 1 : vector<8x15xf32>, vector<8x241xf32> -> vector<8x256xf32>
    %cst_81 = arith.constant 0.000000e+00 : f32
    %121 = vector.shape_cast %98 : vector<1x256xi1> to vector<1x256xi1>
    %122 = vector.broadcast %121 : vector<1x256xi1> to vector<8x256xi1>
    %123 = vector.broadcast %cst_81 : f32 to vector<8x256xf32>
    %124 = arith.select %122, %120, %123 : vector<8x256xi1>, vector<8x256xf32>
    %c11 = arith.constant 11 : index
    %c0_82 = arith.constant 0 : index
    %c0_83 = arith.constant 0 : index
    %125 = vector.load %arg5[%c11, %c0_82, %c0_83] : memref<18x8x8xf32, #tpu.memory_space<vmem>>, vector<1x8x8xf32>
    %126 = vector.shape_cast %125 : vector<1x8x8xf32> to vector<8x8xf32>
    %cst_84 = arith.constant dense<0.000000e+00> : vector<8x256xf32>
    %127 = tpu.matmul %126, %124, %cst_84 {dimension_numbers = #tpu.dot_dimension_numbers<[1], [0], [0], [1], [0, 0, 1, 1], [], []>} : vector<8x8xf32>, vector<8x256xf32>, vector<8x256xf32> -> vector<8x256xf32>
    %128 = arith.addf %117, %127 : vector<8x256xf32>
    %cst_85 = arith.constant 0.000000e+00 : f32
    %129 = vector.broadcast %cst_85 : f32 to vector<8x1xf32>
    %130 = vector.extract_strided_slice %77 {offsets = [0, 0], sizes = [8, 255], strides = [1, 1]} : vector<8x256xf32> to vector<8x255xf32>
    %131 = tpu.concatenate %129, %130 in 1 : vector<8x1xf32>, vector<8x255xf32> -> vector<8x256xf32>
    %cst_86 = arith.constant 0.000000e+00 : f32
    %132 = vector.shape_cast %96 : vector<1x256xi1> to vector<1x256xi1>
    %133 = vector.broadcast %132 : vector<1x256xi1> to vector<8x256xi1>
    %134 = vector.broadcast %cst_86 : f32 to vector<8x256xf32>
    %135 = arith.select %133, %131, %134 : vector<8x256xi1>, vector<8x256xf32>
    %c12 = arith.constant 12 : index
    %c0_87 = arith.constant 0 : index
    %c0_88 = arith.constant 0 : index
    %136 = vector.load %arg5[%c12, %c0_87, %c0_88] : memref<18x8x8xf32, #tpu.memory_space<vmem>>, vector<1x8x8xf32>
    %137 = vector.shape_cast %136 : vector<1x8x8xf32> to vector<8x8xf32>
    %cst_89 = arith.constant dense<0.000000e+00> : vector<8x256xf32>
    %138 = tpu.matmul %137, %135, %cst_89 {dimension_numbers = #tpu.dot_dimension_numbers<[1], [0], [0], [1], [0, 0, 1, 1], [], []>} : vector<8x8xf32>, vector<8x256xf32>, vector<8x256xf32> -> vector<8x256xf32>
    %139 = arith.addf %128, %138 : vector<8x256xf32>
    %c13 = arith.constant 13 : index
    %c0_90 = arith.constant 0 : index
    %c0_91 = arith.constant 0 : index
    %140 = vector.load %arg5[%c13, %c0_90, %c0_91] : memref<18x8x8xf32, #tpu.memory_space<vmem>>, vector<1x8x8xf32>
    %141 = vector.shape_cast %140 : vector<1x8x8xf32> to vector<8x8xf32>
    %cst_92 = arith.constant dense<0.000000e+00> : vector<8x256xf32>
    %142 = tpu.matmul %141, %77, %cst_92 {dimension_numbers = #tpu.dot_dimension_numbers<[1], [0], [0], [1], [0, 0, 1, 1], [], []>} : vector<8x8xf32>, vector<8x256xf32>, vector<8x256xf32> -> vector<8x256xf32>
    %143 = arith.addf %139, %142 : vector<8x256xf32>
    %144 = vector.extract_strided_slice %77 {offsets = [0, 1], sizes = [8, 255], strides = [1, 1]} : vector<8x256xf32> to vector<8x255xf32>
    %cst_93 = arith.constant 0.000000e+00 : f32
    %145 = vector.broadcast %cst_93 : f32 to vector<8x1xf32>
    %146 = tpu.concatenate %144, %145 in 1 : vector<8x255xf32>, vector<8x1xf32> -> vector<8x256xf32>
    %cst_94 = arith.constant 0.000000e+00 : f32
    %147 = vector.shape_cast %98 : vector<1x256xi1> to vector<1x256xi1>
    %148 = vector.broadcast %147 : vector<1x256xi1> to vector<8x256xi1>
    %149 = vector.broadcast %cst_94 : f32 to vector<8x256xf32>
    %150 = arith.select %148, %146, %149 : vector<8x256xi1>, vector<8x256xf32>
    %c14 = arith.constant 14 : index
    %c0_95 = arith.constant 0 : index
    %c0_96 = arith.constant 0 : index
    %151 = vector.load %arg5[%c14, %c0_95, %c0_96] : memref<18x8x8xf32, #tpu.memory_space<vmem>>, vector<1x8x8xf32>
    %152 = vector.shape_cast %151 : vector<1x8x8xf32> to vector<8x8xf32>
    %cst_97 = arith.constant dense<0.000000e+00> : vector<8x256xf32>
    %153 = tpu.matmul %152, %150, %cst_97 {dimension_numbers = #tpu.dot_dimension_numbers<[1], [0], [0], [1], [0, 0, 1, 1], [], []>} : vector<8x8xf32>, vector<8x256xf32>, vector<8x256xf32> -> vector<8x256xf32>
    %154 = arith.addf %143, %153 : vector<8x256xf32>
    %155 = vector.extract_strided_slice %77 {offsets = [0, 15], sizes = [8, 241], strides = [1, 1]} : vector<8x256xf32> to vector<8x241xf32>
    %cst_98 = arith.constant 0.000000e+00 : f32
    %156 = vector.broadcast %cst_98 : f32 to vector<8x15xf32>
    %157 = tpu.concatenate %155, %156 in 1 : vector<8x241xf32>, vector<8x15xf32> -> vector<8x256xf32>
    %cst_99 = arith.constant 0.000000e+00 : f32
    %158 = vector.shape_cast %96 : vector<1x256xi1> to vector<1x256xi1>
    %159 = vector.broadcast %158 : vector<1x256xi1> to vector<8x256xi1>
    %160 = vector.broadcast %cst_99 : f32 to vector<8x256xf32>
    %161 = arith.select %159, %157, %160 : vector<8x256xi1>, vector<8x256xf32>
    %c15 = arith.constant 15 : index
    %c0_100 = arith.constant 0 : index
    %c0_101 = arith.constant 0 : index
    %162 = vector.load %arg5[%c15, %c0_100, %c0_101] : memref<18x8x8xf32, #tpu.memory_space<vmem>>, vector<1x8x8xf32>
    %163 = vector.shape_cast %162 : vector<1x8x8xf32> to vector<8x8xf32>
    %cst_102 = arith.constant dense<0.000000e+00> : vector<8x256xf32>
    %164 = tpu.matmul %163, %161, %cst_102 {dimension_numbers = #tpu.dot_dimension_numbers<[1], [0], [0], [1], [0, 0, 1, 1], [], []>} : vector<8x8xf32>, vector<8x256xf32>, vector<8x256xf32> -> vector<8x256xf32>
    %165 = arith.addf %154, %164 : vector<8x256xf32>
    %166 = vector.extract_strided_slice %77 {offsets = [0, 16], sizes = [8, 240], strides = [1, 1]} : vector<8x256xf32> to vector<8x240xf32>
    %cst_103 = arith.constant 0.000000e+00 : f32
    %167 = vector.broadcast %cst_103 : f32 to vector<8x16xf32>
    %168 = tpu.concatenate %166, %167 in 1 : vector<8x240xf32>, vector<8x16xf32> -> vector<8x256xf32>
    %c16 = arith.constant 16 : index
    %c0_104 = arith.constant 0 : index
    %c0_105 = arith.constant 0 : index
    %169 = vector.load %arg5[%c16, %c0_104, %c0_105] : memref<18x8x8xf32, #tpu.memory_space<vmem>>, vector<1x8x8xf32>
    %170 = vector.shape_cast %169 : vector<1x8x8xf32> to vector<8x8xf32>
    %cst_106 = arith.constant dense<0.000000e+00> : vector<8x256xf32>
    %171 = tpu.matmul %170, %168, %cst_106 {dimension_numbers = #tpu.dot_dimension_numbers<[1], [0], [0], [1], [0, 0, 1, 1], [], []>} : vector<8x8xf32>, vector<8x256xf32>, vector<8x256xf32> -> vector<8x256xf32>
    %172 = arith.addf %165, %171 : vector<8x256xf32>
    %173 = vector.extract_strided_slice %77 {offsets = [0, 17], sizes = [8, 239], strides = [1, 1]} : vector<8x256xf32> to vector<8x239xf32>
    %cst_107 = arith.constant 0.000000e+00 : f32
    %174 = vector.broadcast %cst_107 : f32 to vector<8x17xf32>
    %175 = tpu.concatenate %173, %174 in 1 : vector<8x239xf32>, vector<8x17xf32> -> vector<8x256xf32>
    %cst_108 = arith.constant 0.000000e+00 : f32
    %176 = vector.shape_cast %98 : vector<1x256xi1> to vector<1x256xi1>
    %177 = vector.broadcast %176 : vector<1x256xi1> to vector<8x256xi1>
    %178 = vector.broadcast %cst_108 : f32 to vector<8x256xf32>
    %179 = arith.select %177, %175, %178 : vector<8x256xi1>, vector<8x256xf32>
    %c17 = arith.constant 17 : index
    %c0_109 = arith.constant 0 : index
    %c0_110 = arith.constant 0 : index
    %180 = vector.load %arg5[%c17, %c0_109, %c0_110] : memref<18x8x8xf32, #tpu.memory_space<vmem>>, vector<1x8x8xf32>
    %181 = vector.shape_cast %180 : vector<1x8x8xf32> to vector<8x8xf32>
    %cst_111 = arith.constant dense<0.000000e+00> : vector<8x256xf32>
    %182 = tpu.matmul %181, %179, %cst_111 {dimension_numbers = #tpu.dot_dimension_numbers<[1], [0], [0], [1], [0, 0, 1, 1], [], []>} : vector<8x8xf32>, vector<8x256xf32>, vector<8x256xf32> -> vector<8x256xf32>
    %183 = arith.addf %172, %182 : vector<8x256xf32>
    %c5_112 = arith.constant 5 : index
    %c0_113 = arith.constant 0 : index
    %c0_114 = arith.constant 0 : index
    %184 = vector.load %arg6[%c5_112, %c0_113, %c0_114] : memref<6x8x1xf32, #tpu.memory_space<vmem>>, vector<1x8x1xf32>
    %185 = vector.shape_cast %184 : vector<1x8x1xf32> to vector<8x1xf32>
    %186 = vector.broadcast %185 : vector<8x1xf32> to vector<8x256xf32>
    %187 = arith.addf %183, %186 : vector<8x256xf32>
    %cst_115 = arith.constant 0.000000e+00 : f32
    %188 = vector.broadcast %cst_115 : f32 to vector<8x256xf32>
    %189 = arith.maximumf %187, %188 : vector<8x256xf32>
    %190 = arith.addf %189, %20 : vector<8x256xf32>
    %c0_116 = arith.constant 0 : index
    %c0_117 = arith.constant 0 : index
    %c0_118 = arith.constant 0 : index
    %191 = vector.load %arg7[%c0_116, %c0_117, %c0_118] : memref<1x8x256xf32, #tpu.memory_space<vmem>>, vector<1x8x256xf32>
    %192 = vector.shape_cast %191 : vector<1x8x256xf32> to vector<8x256xf32>
    %193 = vector.shape_cast %190 : vector<8x256xf32> to vector<1x8x256xf32>
    tpu.vector_store %arg7[%c0_116, %c0_117, %c0_118], %193 {strides = array<i32>} : memref<1x8x256xf32, #tpu.memory_space<vmem>>, vector<1x8x256xf32>,
    return
  }
  func.func @transform_0(%arg0: i32) -> (i32, i32, i32) {
    %c0_i32 = arith.constant 0 : i32
    %c0_i32_0 = arith.constant 0 : i32
    %c0_i32_1 = arith.constant 0 : i32
    return %arg0, %c0_i32, %c0_i32_0 : i32, i32, i32
  }
  func.func @transform_1(%arg0: i32) -> (i32, i32, i32) {
    %c0_i32 = arith.constant 0 : i32
    %c0_i32_0 = arith.constant 0 : i32
    %c0_i32_1 = arith.constant 0 : i32
    return %arg0, %c0_i32, %c0_i32_0 : i32, i32, i32
  }
  func.func @transform_2(%arg0: i32) -> (i32, i32, i32) {
    %c0_i32 = arith.constant 0 : i32
    %c0_i32_0 = arith.constant 0 : i32
    %c0_i32_1 = arith.constant 0 : i32
    return %arg0, %c0_i32, %c0_i32_0 : i32, i32, i32
  }
  func.func @transform_3(%arg0: i32) -> (i32, i32, i32) {
    %c0_i32 = arith.constant 0 : i32
    %c0_i32_0 = arith.constant 0 : i32
    %c0_i32_1 = arith.constant 0 : i32
    return %arg0, %c0_i32, %c0_i32_0 : i32, i32, i32
  }
  func.func @transform_4(%arg0: i32) -> (i32, i32, i32) {
    %c0_i32 = arith.constant 0 : i32
    %c0_i32_0 = arith.constant 0 : i32
    %c0_i32_1 = arith.constant 0 : i32
    %c0_i32_2 = arith.constant 0 : i32
    return %c0_i32, %c0_i32_0, %c0_i32_1 : i32, i32, i32
  }
  func.func @transform_5(%arg0: i32) -> (i32, i32, i32) {
    %c0_i32 = arith.constant 0 : i32
    %c0_i32_0 = arith.constant 0 : i32
    %c0_i32_1 = arith.constant 0 : i32
    %c0_i32_2 = arith.constant 0 : i32
    return %c0_i32, %c0_i32_0, %c0_i32_1 : i32, i32, i32
  }
  func.func @transform_6(%arg0: i32) -> (i32, i32, i32) {
    %c0_i32 = arith.constant 0 : i32
    %c0_i32_0 = arith.constant 0 : i32
    %c0_i32_1 = arith.constant 0 : i32
    return %arg0, %c0_i32, %c0_i32_0 : i32, i32, i32
  }
}

</mosaic_0001>

<llo_original>
// kernel: bcif_forward.1
$region0: #{bcif_forward.1}
  #allocation0 [shape = 'u32[]', space=smem, size = 0x4, offset = 0x4, fixed_abs, tag = 'smem constant byte address 0x4 - core index']
  #allocation1 [shape = 'u32[72,128]{1,0:T(1,128)}', space=vmem, size = 0x9000, scoped, tag = 'internal scratch']
  %s0 = inlined_call_operand.vmem [shape: f32[2,8,256], index: 0, kind: input, shape index: {}]
  %s1 = inlined_call_operand.vmem [shape: f32[2,8,256], index: 1, kind: input, shape index: {}]
  %s2 = inlined_call_operand.vmem [shape: f32[2,8,256], index: 2, kind: input, shape index: {}]
  %s3 = inlined_call_operand.vmem [shape: f32[2,8,256], index: 3, kind: input, shape index: {}]
  %s4 = inlined_call_operand.vmem [shape: f32[18,8,8], index: 4, kind: input, shape index: {}]
  %s5 = inlined_call_operand.vmem [shape: f32[6,8,1], index: 5, kind: input, shape index: {}]
  %s6 = inlined_call_operand.vmem [shape: f32[2,8,256], index: 6, kind: output, shape index: {}]
  %s7 = sld [smem:[#allocation0]]
  $region57: #{bcif_forward.1} parent=0
    _
  %s9 = ssub.s32 1, %s7
  %s10 = scalar_select 0, %s9, %s7
  loop: start=0, step=1, limit=4
  $region2: #{bcif_forward.1} parent=0 // loop_pre_header
    _
  $region3: #{bcif_forward.1} parent=0 // loop_header
    %s12 = sphi 0, %s16
    %p13 = scmp.ge.s32.totalorder %s12, 4
    %s22 = sphi 0, %s24
    %s25 = sphi 0, %s22
    %s26 = sphi 0, %s25
    %s42 = sphi 0, %s26
    %s48 = sphi 0, %s50
    %s51 = sphi 0, %s48
    %s52 = sphi 0, %s51
    %s68 = sphi 0, %s52
    %s74 = sphi 0, %s76
    %s77 = sphi 0, %s74
    %s78 = sphi 0, %s77
    %s94 = sphi 0, %s78
    %s100 = sphi 0, %s102
    %s103 = sphi 0, %s100
    %s104 = sphi 0, %s103
    %s120 = sphi 0, %s104
    %s124 = sphi 0, %s124
    %s126 = sphi 0, %s124
    %s127 = sphi 0, %s126
    %s141 = sphi 0, %s127
    %s145 = sphi 0, %s145
    %s147 = sphi 0, %s145
    %s148 = sphi 0, %s147
    %s162 = sphi 0, %s148
    %s168 = sphi 0, %s170
    %s171 = sphi 0, %s168
    %s172 = sphi 0, %s171
    %s188 = sphi 0, %s172
  $region4: #{bcif_forward.1} parent=0 // loop_header_branch
    %15 = sbr.rel (%p13) target = $region8
  $region5: #{bcif_forward.1} parent=0 // loop_body
    %s17 = ssub.s32 %s12, 1
    %s18 = ssub.s32 %s12, 2
    %s19 = sadd.s32 %s12, 1
    %s20 = ssub.s32 %s12, %s19
    %p21 = scmp.eq.s32.totalorder %s20, 0
    %s23 = sadd.s32 %s22, 1
    %s24 = scalar_select %p21, %s22, %s23
    %p27 = pneg %p21
    %p28 = scmp.eq.s32.totalorder %s12, 1
    %p29 = por %p27, %p28
    %p30 = scmp.ne.s32.totalorder %s22, %s25
    %p31 = scmp.eq.s32.totalorder %s12, 0
    %p32 = por %p30, %p31
    %p33 = scmp.ne.s32.totalorder %s22, %s25
    %p34 = scmp.eq.s32.totalorder %s17, 1
    %p35 = por %p33, %p34
    %p36 = scmp.ne.s32.totalorder %s25, %s26
    %p37 = scmp.eq.s32.totalorder %s17, 0
    %p38 = por %p36, %p37
    %p39 = scmp.ne.s32.totalorder %s25, %s26
    %p40 = scmp.eq.s32.totalorder %s18, 1
    %p41 = por %p39, %p40
    %p43 = scmp.ne.s32.totalorder %s26, %s42
    %p44 = scmp.eq.s32.totalorder %s18, 0
    %p45 = por %p43, %p44
    %s46 = ssub.s32 %s12, %s19
    %p47 = scmp.eq.s32.totalorder %s46, 0
    %s49 = sadd.s32 %s48, 1
    %s50 = scalar_select %p47, %s48, %s49
    %p53 = pneg %p47
    %p54 = scmp.eq.s32.totalorder %s12, 1
    %p55 = por %p53, %p54
    %p56 = scmp.ne.s32.totalorder %s48, %s51
    %p57 = scmp.eq.s32.totalorder %s12, 0
    %p58 = por %p56, %p57
    %p59 = scmp.ne.s32.totalorder %s48, %s51
    %p60 = scmp.eq.s32.totalorder %s17, 1
    %p61 = por %p59, %p60
    %p62 = scmp.ne.s32.totalorder %s51, %s52
    %p63 = scmp.eq.s32.totalorder %s17, 0
    %p64 = por %p62, %p63
    %p65 = scmp.ne.s32.totalorder %s51, %s52
    %p66 = scmp.eq.s32.totalorder %s18, 1
    %p67 = por %p65, %p66
    %p69 = scmp.ne.s32.totalorder %s52, %s68
    %p70 = scmp.eq.s32.totalorder %s18, 0
    %p71 = por %p69, %p70
    %s72 = ssub.s32 %s12, %s19
    %p73 = scmp.eq.s32.totalorder %s72, 0
    %s75 = sadd.s32 %s74, 1
    %s76 = scalar_select %p73, %s74, %s75
    %p79 = pneg %p73
    %p80 = scmp.eq.s32.totalorder %s12, 1
    %p81 = por %p79, %p80
    %p82 = scmp.ne.s32.totalorder %s74, %s77
    %p83 = scmp.eq.s32.totalorder %s12, 0
    %p84 = por %p82, %p83
    %p85 = scmp.ne.s32.totalorder %s74, %s77
    %p86 = scmp.eq.s32.totalorder %s17, 1
    %p87 = por %p85, %p86
    %p88 = scmp.ne.s32.totalorder %s77, %s78
    %p89 = scmp.eq.s32.totalorder %s17, 0
    %p90 = por %p88, %p89
    %p91 = scmp.ne.s32.totalorder %s77, %s78
    %p92 = scmp.eq.s32.totalorder %s18, 1
    %p93 = por %p91, %p92
    %p95 = scmp.ne.s32.totalorder %s78, %s94
    %p96 = scmp.eq.s32.totalorder %s18, 0
    %p97 = por %p95, %p96
    %s98 = ssub.s32 %s12, %s19
    %p99 = scmp.eq.s32.totalorder %s98, 0
    %s101 = sadd.s32 %s100, 1
    %s102 = scalar_select %p99, %s100, %s101
    %p105 = pneg %p99
    %p106 = scmp.eq.s32.totalorder %s12, 1
    %p107 = por %p105, %p106
    %p108 = scmp.ne.s32.totalorder %s100, %s103
    %p109 = scmp.eq.s32.totalorder %s12, 0
    %p110 = por %p108, %p109
    %p111 = scmp.ne.s32.totalorder %s100, %s103
    %p112 = scmp.eq.s32.totalorder %s17, 1
    %p113 = por %p111, %p112
    %p114 = scmp.ne.s32.totalorder %s103, %s104
    %p115 = scmp.eq.s32.totalorder %s17, 0
    %p116 = por %p114, %p115
    %p117 = scmp.ne.s32.totalorder %s103, %s104
    %p118 = scmp.eq.s32.totalorder %s18, 1
    %p119 = por %p117, %p118
    %p121 = scmp.ne.s32.totalorder %s104, %s120
    %p122 = scmp.eq.s32.totalorder %s18, 0
    %p123 = por %p121, %p122
    %s125 = sadd.s32 %s124, 1
    %p128 = scmp.eq.s32.totalorder %s12, 1
    %p129 = scmp.ne.s32.totalorder %s124, %s126
    %p130 = scmp.eq.s32.totalorder %s12, 0
    %p131 = por %p129, %p130
    %p132 = scmp.ne.s32.totalorder %s124, %s126
    %p133 = scmp.eq.s32.totalorder %s17, 1
    %p134 = por %p132, %p133
    %p135 = scmp.ne.s32.totalorder %s126, %s127
    %p136 = scmp.eq.s32.totalorder %s17, 0
    %p137 = por %p135, %p136
    %p138 = scmp.ne.s32.totalorder %s126, %s127
    %p139 = scmp.eq.s32.totalorder %s18, 1
    %p140 = por %p138, %p139
    %p142 = scmp.ne.s32.totalorder %s127, %s141
    %p143 = scmp.eq.s32.totalorder %s18, 0
    %p144 = por %p142, %p143
    %s146 = sadd.s32 %s145, 1
    %p149 = scmp.eq.s32.totalorder %s12, 1
    %p150 = scmp.ne.s32.totalorder %s145, %s147
    %p151 = scmp.eq.s32.totalorder %s12, 0
    %p152 = por %p150, %p151
    %p153 = scmp.ne.s32.totalorder %s145, %s147
    %p154 = scmp.eq.s32.totalorder %s17, 1
    %p155 = por %p153, %p154
    %p156 = scmp.ne.s32.totalorder %s147, %s148
    %p157 = scmp.eq.s32.totalorder %s17, 0
    %p158 = por %p156, %p157
    %p159 = scmp.ne.s32.totalorder %s147, %s148
    %p160 = scmp.eq.s32.totalorder %s18, 1
    %p161 = por %p159, %p160
    %p163 = scmp.ne.s32.totalorder %s148, %s162
    %p164 = scmp.eq.s32.totalorder %s18, 0
    %p165 = por %p163, %p164
    %s166 = ssub.s32 %s12, %s19
    %p167 = scmp.eq.s32.totalorder %s166, 0
    %s169 = sadd.s32 %s168, 1
    %s170 = scalar_select %p167, %s168, %s169
    %p173 = pneg %p167
    %p174 = scmp.eq.s32.totalorder %s12, 1
    %p175 = por %p173, %p174
    %p176 = scmp.ne.s32.totalorder %s168, %s171
    %p177 = scmp.eq.s32.totalorder %s12, 0
    %p178 = por %p176, %p177
    %p179 = scmp.ne.s32.totalorder %s168, %s171
    %p180 = scmp.eq.s32.totalorder %s17, 1
    %p181 = por %p179, %p180
    %p182 = scmp.ne.s32.totalorder %s171, %s172
    %p183 = scmp.eq.s32.totalorder %s17, 0
    %p184 = por %p182, %p183
    %p185 = scmp.ne.s32.totalorder %s171, %s172
    %p186 = scmp.eq.s32.totalorder %s18, 1
    %p187 = por %p185, %p186
    %p189 = scmp.ne.s32.totalorder %s172, %s188
    %p190 = scmp.eq.s32.totalorder %s18, 0
    %p191 = por %p189, %p190
    %p192 = scmp.le.s32.totalorder 1, %s12
    %p193 = scmp.lt.s32.totalorder %s12, 3
    %p194 = pnand %p192, %p193
    %p195 = pneg %p194
    // Predicated region
    $region9: #{bcif_forward.1} parent=5 // pred_check
      _
    $region10: #{bcif_forward.1} parent=5 // pred_check_branch
      %197 = sbr.rel (%p194) target = $region12
    $region11: #{bcif_forward.1} parent=5 // pred_region
      %s198 = ssub.s32 %s12, 1
      // Predicated region
      $region13: #{bcif_forward.1} parent=11 // pred_check
        %p199 = pneg %p137
      $region14: #{bcif_forward.1} parent=11 // pred_check_branch
        %201 = sbr.rel (%p199) target = $region16
      $region15: #{bcif_forward.1} parent=11 // pred_region
        _
      $region16: #{bcif_forward.1} parent=11 // pred_fallthru
        _
      // Predicated region
      $region17: #{bcif_forward.1} parent=11 // pred_check
        %p202 = pneg %p158
      $region18: #{bcif_forward.1} parent=11 // pred_check_branch
        %204 = sbr.rel (%p202) target = $region20
      $region19: #{bcif_forward.1} parent=11 // pred_region
        _
      $region20: #{bcif_forward.1} parent=11 // pred_fallthru
        _
    $region12: #{bcif_forward.1} parent=5 // pred_fallthru
      _
    %p205 = scmp.lt.s32.totalorder %s12, 2
    // Predicated region
    $region21: #{bcif_forward.1} parent=5 // pred_check
      %p206 = pneg %p205
    $region22: #{bcif_forward.1} parent=5 // pred_check_branch
      %208 = sbr.rel (%p206) target = $region24
    $region23: #{bcif_forward.1} parent=5 // pred_region
      // Predicated region
      $region25: #{bcif_forward.1} parent=23 // pred_check
        %p209 = pneg %p32
      $region26: #{bcif_forward.1} parent=23 // pred_check_branch
        %211 = sbr.rel (%p209) target = $region28
      $region27: #{bcif_forward.1} parent=23 // pred_region
        %p212 = scmp.lt.s32.totalorder %s12, 1
        %s213 = scalar_select %p212, %s12, 1
        %s214 = smul.addr %s213, 2
        %s215 = smul.addr %s214, 8
        %s216 = scalar_lea.vmem %s0, %s215
      $region28: #{bcif_forward.1} parent=23 // pred_fallthru
        _
      // Predicated region
      $region29: #{bcif_forward.1} parent=23 // pred_check
        %p217 = pneg %p58
      $region30: #{bcif_forward.1} parent=23 // pred_check_branch
        %219 = sbr.rel (%p217) target = $region32
      $region31: #{bcif_forward.1} parent=23 // pred_region
        %p220 = scmp.lt.s32.totalorder %s12, 1
        %s221 = scalar_select %p220, %s12, 1
        %s222 = smul.addr %s221, 2
        %s223 = smul.addr %s222, 8
        %s224 = scalar_lea.vmem %s1, %s223
      $region32: #{bcif_forward.1} parent=23 // pred_fallthru
        _
      // Predicated region
      $region33: #{bcif_forward.1} parent=23 // pred_check
        %p225 = pneg %p84
      $region34: #{bcif_forward.1} parent=23 // pred_check_branch
        %227 = sbr.rel (%p225) target = $region36
      $region35: #{bcif_forward.1} parent=23 // pred_region
        %p228 = scmp.lt.s32.totalorder %s12, 1
        %s229 = scalar_select %p228, %s12, 1
        %s230 = smul.addr %s229, 2
        %s231 = smul.addr %s230, 8
        %s232 = scalar_lea.vmem %s2, %s231
      $region36: #{bcif_forward.1} parent=23 // pred_fallthru
        _
      // Predicated region
      $region37: #{bcif_forward.1} parent=23 // pred_check
        %p233 = pneg %p110
      $region38: #{bcif_forward.1} parent=23 // pred_check_branch
        %235 = sbr.rel (%p233) target = $region40
      $region39: #{bcif_forward.1} parent=23 // pred_region
        %p236 = scmp.lt.s32.totalorder %s12, 1
        %s237 = scalar_select %p236, %s12, 1
        %s238 = smul.addr %s237, 2
        %s239 = smul.addr %s238, 8
        %s240 = scalar_lea.vmem %s3, %s239
      $region40: #{bcif_forward.1} parent=23 // pred_fallthru
        _
    $region24: #{bcif_forward.1} parent=5 // pred_fallthru
      _
    %p241 = scmp.le.s32.totalorder 1, %s12
    %p242 = scmp.lt.s32.totalorder %s12, 3
    %p243 = pnand %p241, %p242
    %p244 = pneg %p243
    // Predicated region
    $region41: #{bcif_forward.1} parent=5 // pred_check
      _
    $region42: #{bcif_forward.1} parent=5 // pred_check_branch
      %246 = sbr.rel (%p243) target = $region44
    $region43: #{bcif_forward.1} parent=5 // pred_region
      %s247 = ssub.s32 %s12, 1
      %p248 = scmp.lt.s32.totalorder %s17, 1
      %s249 = scalar_select %p248, %s17, 1
      %s250 = smul.addr %s249, 2
      %s251 = smul.addr %s250, 8
      %s252 = scalar_lea.vmem %s0, %s251
      %p253 = pneg %p38
      %p254 = pneg %p35
      %p255 = scmp.lt.s32.totalorder %s17, 1
      %s256 = scalar_select %p255, %s17, 1
      %s257 = smul.addr %s256, 2
      %s258 = smul.addr %s257, 8
      %s259 = scalar_lea.vmem %s1, %s258
      %p260 = pneg %p64
      %p261 = pneg %p61
      %p262 = scmp.lt.s32.totalorder %s17, 1
      %s263 = scalar_select %p262, %s17, 1
      %s264 = smul.addr %s263, 2
      %s265 = smul.addr %s264, 8
      %s266 = scalar_lea.vmem %s2, %s265
      %p267 = pneg %p90
      %p268 = pneg %p87
      %p269 = scmp.lt.s32.totalorder %s17, 1
      %s270 = scalar_select %p269, %s17, 1
      %s271 = smul.addr %s270, 2
      %s272 = smul.addr %s271, 8
      %s273 = scalar_lea.vmem %s3, %s272
      %p274 = pneg %p116
      %p275 = pneg %p113
      %p276 = pneg %p137
      %p277 = pneg %p134
      %p278 = pneg %p158
      %p279 = pneg %p155
      %p280 = pneg %p184
      %p281 = pneg %p181
      %p282 = scmp.lt.s32.totalorder %s17, 1
      %s283 = scalar_select %p282, %s17, 1
      %s284 = smul.addr %s283, 2
      %s285 = smul.addr %s284, 8
      %s286 = scalar_lea.vmem %s6, %s285
      %p287 = scmp.lt.s32.totalorder %s17, 1
      %s288 = scalar_select %p287, %s17, 1
      %s289 = smul.addr %s288, 2
      %s290 = smul.addr %s289, 8
      %s291 = scalar_lea.vmem %s0, %s290
      %p292 = scmp.lt.s32.totalorder %s17, 1
      %s293 = scalar_select %p292, %s17, 1
      %s294 = smul.addr %s293, 2
      %s295 = smul.addr %s294, 8
      %s296 = scalar_lea.vmem %s1, %s295
      %p297 = scmp.lt.s32.totalorder %s17, 1
      %s298 = scalar_select %p297, %s17, 1
      %s299 = smul.addr %s298, 2
      %s300 = smul.addr %s299, 8
      %s301 = scalar_lea.vmem %s2, %s300
      %p302 = scmp.lt.s32.totalorder %s17, 1
      %s303 = scalar_select %p302, %s17, 1
      %s304 = smul.addr %s303, 2
      %s305 = smul.addr %s304, 8
      %s306 = scalar_lea.vmem %s3, %s305
      %p307 = scmp.lt.s32.totalorder %s17, 1
      %s308 = scalar_select %p307, %s17, 1
      %s309 = smul.addr %s308, 2
      %s310 = smul.addr %s309, 8
      %s311 = scalar_lea.vmem %s6, %s310
      %v312 = vld [vmem:[%s291] sm:$0xff]
      %v313 = vld [vmem:[%s291 + $0x8] sm:$0xff]
      %v314 = vld [vmem:[%s296] sm:$0xff]
      %v315 = vld [vmem:[%s296 + $0x8] sm:$0xff]
      %v316 = vld [vmem:[%s301] sm:$0xff]
      %v317 = vld [vmem:[%s301 + $0x8] sm:$0xff]
      %v318 = vld [vmem:[%s306] sm:$0xff]
      %v319 = vld [vmem:[%s306 + $0x8] sm:$0xff]
      %v320 = vld [vmem:[%s4] sm:$0xff]
      %s321 = scalar_lea.vmem %s4, 8
      %v322 = vld [vmem:[%s321] sm:$0xff]
      %vm323 = vcmask 64512
      %v325 = vsel %vm323, %v322, 0
      %327 = vmatpush.msra.mxu0 0.0
      %328 = vmatpush.msra.mxu0 0.0
      %329 = vmatpush.msra.mxu0 0.0
      %330 = vmatpush.msra.mxu0 0.0
      %331 = vmatpush.msra.mxu0 0.0
      %332 = vmatpush.msra.mxu0 0.0
      %333 = vmatpush.msra.mxu0 0.0
      %334 = vmatpush.msra.mxu0 0.0
      %335 = vmatpush.msra.mxu0 0.0
      %336 = vmatpush.msra.mxu0 0.0
      %337 = vmatpush.msra.mxu0 0.0
      %338 = vmatpush.msra.mxu0 0.0
      %339 = vmatpush.msra.mxu0 0.0
      %340 = vmatpush.msra.mxu0 0.0
      %341 = vmatpush.msra.mxu0 0.0
      %342 = vmatpush.msra.mxu0 %v314
      %343 = vmatmul.f32.gmra.mxu0 %v325
      %v344 = vpop.f32.mrf.mxu0
      %v345 = vadd.f32 0.0, %v344
      %346 = vdwg.mxu0
      %347 = vmatpush.msra.mxu0 0.0
      %348 = vmatpush.msra.mxu0 0.0
      %349 = vmatpush.msra.mxu0 0.0
      %350 = vmatpush.msra.mxu0 0.0
      %351 = vmatpush.msra.mxu0 0.0
      %352 = vmatpush.msra.mxu0 0.0
      %353 = vmatpush.msra.mxu0 0.0
      %354 = vmatpush.msra.mxu0 0.0
      %355 = vmatpush.msra.mxu0 0.0
      %356 = vmatpush.msra.mxu0 0.0
      %357 = vmatpush.msra.mxu0 0.0
      %358 = vmatpush.msra.mxu0 0.0
      %359 = vmatpush.msra.mxu0 0.0
      %360 = vmatpush.msra.mxu0 0.0
      %361 = vmatpush.msra.mxu0 0.0
      %362 = vmatpush.msra.mxu0 %v315
      %363 = vmatmul.f32.gmra.mxu0 %v325
      %v364 = vpop.f32.mrf.mxu0
      %v365 = vadd.f32 0.0, %v364
      %366 = vdwg.mxu0
      %v368 = vsel %vm323, %v320, 0
      %370 = vmatpush.msra.mxu0 0.0
      %371 = vmatpush.msra.mxu0 0.0
      %372 = vmatpush.msra.mxu0 0.0
      %373 = vmatpush.msra.mxu0 0.0
      %374 = vmatpush.msra.mxu0 0.0
      %375 = vmatpush.msra.mxu0 0.0
      %376 = vmatpush.msra.mxu0 0.0
      %377 = vmatpush.msra.mxu0 0.0
      %378 = vmatpush.msra.mxu0 0.0
      %379 = vmatpush.msra.mxu0 0.0
      %380 = vmatpush.msra.mxu0 0.0
      %381 = vmatpush.msra.mxu0 0.0
      %382 = vmatpush.msra.mxu0 0.0
      %383 = vmatpush.msra.mxu0 0.0
      %384 = vmatpush.msra.mxu0 0.0
      %385 = vmatpush.msra.mxu0 %v312
      %386 = vmatmul.f32.gmra.mxu0 %v368
      %v387 = vpop.f32.mrf.mxu0
      %v388 = vadd.f32 %v345, %v387
      %389 = vdwg.mxu0
      %390 = vmatpush.msra.mxu0 0.0
      %391 = vmatpush.msra.mxu0 0.0
      %392 = vmatpush.msra.mxu0 0.0
      %393 = vmatpush.msra.mxu0 0.0
      %394 = vmatpush.msra.mxu0 0.0
      %395 = vmatpush.msra.mxu0 0.0
      %396 = vmatpush.msra.mxu0 0.0
      %397 = vmatpush.msra.mxu0 0.0
      %398 = vmatpush.msra.mxu0 0.0
      %399 = vmatpush.msra.mxu0 0.0
      %400 = vmatpush.msra.mxu0 0.0
      %401 = vmatpush.msra.mxu0 0.0
      %402 = vmatpush.msra.mxu0 0.0
      %403 = vmatpush.msra.mxu0 0.0
      %404 = vmatpush.msra.mxu0 0.0
      %405 = vmatpush.msra.mxu0 %v313
      %406 = vmatmul.f32.gmra.mxu0 %v368
      %v407 = vpop.f32.mrf.mxu0
      %v408 = vadd.f32 %v365, %v407
      %409 = vdwg.mxu0
      %v410 = vld [vmem:[%s5] sm:$0xff]
      %412 = vset.pattern.permute.xlu0 0
      %413 = vperm.xlu0 %412, %v410
      %v414 = vpop.permute.xlu0 %413
      %v416 = vadd.f32 %v388, %v414
      %v417 = vadd.f32 %v408, %v414
      %v418 = vmax.f32 %v416, 0.0
      %v419 = vmax.f32 %v417, 0.0
      %s420 = scalar_lea.vmem %s4, 16
      %v421 = vld [vmem:[%s420] sm:$0xff]
      %s422 = scalar_lea.vmem %s4, 24
      %v423 = vld [vmem:[%s422] sm:$0xff]
      %v425 = vsel %vm323, %v423, 0
      %427 = vmatpush.msra.mxu0 0.0
      %428 = vmatpush.msra.mxu0 0.0
      %429 = vmatpush.msra.mxu0 0.0
      %430 = vmatpush.msra.mxu0 0.0
      %431 = vmatpush.msra.mxu0 0.0
      %432 = vmatpush.msra.mxu0 0.0
      %433 = vmatpush.msra.mxu0 0.0
      %434 = vmatpush.msra.mxu0 0.0
      %435 = vmatpush.msra.mxu0 0.0
      %436 = vmatpush.msra.mxu0 0.0
      %437 = vmatpush.msra.mxu0 0.0
      %438 = vmatpush.msra.mxu0 0.0
      %439 = vmatpush.msra.mxu0 0.0
      %440 = vmatpush.msra.mxu0 0.0
      %441 = vmatpush.msra.mxu0 0.0
      %442 = vmatpush.msra.mxu0 %v314
      %443 = vmatmul.f32.gmra.mxu0 %v425
      %v444 = vpop.f32.mrf.mxu0
      %v445 = vadd.f32 0.0, %v444
      %446 = vdwg.mxu0
      %447 = vmatpush.msra.mxu0 0.0
      %448 = vmatpush.msra.mxu0 0.0
      %449 = vmatpush.msra.mxu0 0.0
      %450 = vmatpush.msra.mxu0 0.0
      %451 = vmatpush.msra.mxu0 0.0
      %452 = vmatpush.msra.mxu0 0.0
      %453 = vmatpush.msra.mxu0 0.0
      %454 = vmatpush.msra.mxu0 0.0
      %455 = vmatpush.msra.mxu0 0.0
      %456 = vmatpush.msra.mxu0 0.0
      %457 = vmatpush.msra.mxu0 0.0
      %458 = vmatpush.msra.mxu0 0.0
      %459 = vmatpush.msra.mxu0 0.0
      %460 = vmatpush.msra.mxu0 0.0
      %461 = vmatpush.msra.mxu0 0.0
      %462 = vmatpush.msra.mxu0 %v315
      %463 = vmatmul.f32.gmra.mxu0 %v425
      %v464 = vpop.f32.mrf.mxu0
      %v465 = vadd.f32 0.0, %v464
      %466 = vdwg.mxu0
      %v468 = vsel %vm323, %v421, 0
      %470 = vmatpush.msra.mxu0 0.0
      %471 = vmatpush.msra.mxu0 0.0
      %472 = vmatpush.msra.mxu0 0.0
      %473 = vmatpush.msra.mxu0 0.0
      %474 = vmatpush.msra.mxu0 0.0
      %475 = vmatpush.msra.mxu0 0.0
      %476 = vmatpush.msra.mxu0 0.0
      %477 = vmatpush.msra.mxu0 0.0
      %478 = vmatpush.msra.mxu0 0.0
      %479 = vmatpush.msra.mxu0 0.0
      %480 = vmatpush.msra.mxu0 0.0
      %481 = vmatpush.msra.mxu0 0.0
      %482 = vmatpush.msra.mxu0 0.0
      %483 = vmatpush.msra.mxu0 0.0
      %484 = vmatpush.msra.mxu0 0.0
      %485 = vmatpush.msra.mxu0 %v312
      %486 = vmatmul.f32.gmra.mxu0 %v468
      %v487 = vpop.f32.mrf.mxu0
      %v488 = vadd.f32 %v445, %v487
      %489 = vdwg.mxu0
      %490 = vmatpush.msra.mxu0 0.0
      %491 = vmatpush.msra.mxu0 0.0
      %492 = vmatpush.msra.mxu0 0.0
      %493 = vmatpush.msra.mxu0 0.0
      %494 = vmatpush.msra.mxu0 0.0
      %495 = vmatpush.msra.mxu0 0.0
      %496 = vmatpush.msra.mxu0 0.0
      %497 = vmatpush.msra.mxu0 0.0
      %498 = vmatpush.msra.mxu0 0.0
      %499 = vmatpush.msra.mxu0 0.0
      %500 = vmatpush.msra.mxu0 0.0
      %501 = vmatpush.msra.mxu0 0.0
      %502 = vmatpush.msra.mxu0 0.0
      %503 = vmatpush.msra.mxu0 0.0
      %504 = vmatpush.msra.mxu0 0.0
      %505 = vmatpush.msra.mxu0 %v313
      %506 = vmatmul.f32.gmra.mxu0 %v468
      %v507 = vpop.f32.mrf.mxu0
      %v508 = vadd.f32 %v465, %v507
      %509 = vdwg.mxu0
      %s510 = scalar_lea.vmem %s5, 8
      %v511 = vld [vmem:[%s510] sm:$0xff]
      %513 = vset.pattern.permute.xlu0 0
      %514 = vperm.xlu0 %513, %v511
      %v515 = vpop.permute.xlu0 %514
      %v517 = vadd.f32 %v488, %v515
      %v518 = vadd.f32 %v508, %v515
      %v519 = vmax.f32 %v517, 0.0
      %v520 = vmax.f32 %v518, 0.0
      %s521 = scalar_lea.vmem %s4, 32
      %v522 = vld [vmem:[%s521] sm:$0xff]
      %s523 = scalar_lea.vmem %s5, 16
      %v524 = vld [vmem:[%s523] sm:$0xff]
      %526 = vset.pattern.permute.xlu0 0
      %527 = vperm.xlu0 %526, %v524
      %v528 = vpop.permute.xlu0 %527
      %v531 = vsel %vm323, %v522, 0
      %533 = vmatpush.msra.mxu0 0.0
      %534 = vmatpush.msra.mxu0 0.0
      %535 = vmatpush.msra.mxu0 0.0
      %536 = vmatpush.msra.mxu0 0.0
      %537 = vmatpush.msra.mxu0 0.0
      %538 = vmatpush.msra.mxu0 0.0
      %539 = vmatpush.msra.mxu0 0.0
      %540 = vmatpush.msra.mxu0 0.0
      %541 = vmatpush.msra.mxu0 0.0
      %542 = vmatpush.msra.mxu0 0.0
      %543 = vmatpush.msra.mxu0 0.0
      %544 = vmatpush.msra.mxu0 0.0
      %545 = vmatpush.msra.mxu0 0.0
      %546 = vmatpush.msra.mxu0 0.0
      %547 = vmatpush.msra.mxu0 0.0
      %548 = vmatpush.msra.mxu0 %v316
      %549 = vmatmul.f32.gmra.mxu0 %v531
      %v550 = vpop.f32.mrf.mxu0
      %v551 = vadd.f32 %v528, %v550
      %552 = vdwg.mxu0
      %553 = vmatpush.msra.mxu0 0.0
      %554 = vmatpush.msra.mxu0 0.0
      %555 = vmatpush.msra.mxu0 0.0
      %556 = vmatpush.msra.mxu0 0.0
      %557 = vmatpush.msra.mxu0 0.0
      %558 = vmatpush.msra.mxu0 0.0
      %559 = vmatpush.msra.mxu0 0.0
      %560 = vmatpush.msra.mxu0 0.0
      %561 = vmatpush.msra.mxu0 0.0
      %562 = vmatpush.msra.mxu0 0.0
      %563 = vmatpush.msra.mxu0 0.0
      %564 = vmatpush.msra.mxu0 0.0
      %565 = vmatpush.msra.mxu0 0.0
      %566 = vmatpush.msra.mxu0 0.0
      %567 = vmatpush.msra.mxu0 0.0
      %568 = vmatpush.msra.mxu0 %v317
      %569 = vmatmul.f32.gmra.mxu0 %v531
      %v570 = vpop.f32.mrf.mxu0
      %v571 = vadd.f32 %v528, %v570
      %572 = vdwg.mxu0
      %v573 = vmax.f32 %v551, 0.0
      %v574 = vmax.f32 %v571, 0.0
      %575 = vmatpush.msra.mxu0 0.0
      %576 = vmatpush.msra.mxu0 0.0
      %577 = vmatpush.msra.mxu0 0.0
      %578 = vmatpush.msra.mxu0 0.0
      %579 = vmatpush.msra.mxu0 0.0
      %580 = vmatpush.msra.mxu0 0.0
      %581 = vmatpush.msra.mxu0 0.0
      %582 = vmatpush.msra.mxu0 0.0
      %583 = vmatpush.msra.mxu0 0.0
      %584 = vmatpush.msra.mxu0 0.0
      %585 = vmatpush.msra.mxu0 0.0
      %586 = vmatpush.msra.mxu0 0.0
      %587 = vmatpush.msra.mxu0 0.0
      %588 = vmatpush.msra.mxu0 0.0
      %589 = vmatpush.msra.mxu0 0.0
      %590 = vmatpush.msra.mxu0 %v318
      %591 = vmatmul.f32.gmra.mxu0 %v531
      %v592 = vpop.f32.mrf.mxu0
      %v593 = vadd.f32 %v528, %v592
      %594 = vdwg.mxu0
      %595 = vmatpush.msra.mxu0 0.0
      %596 = vmatpush.msra.mxu0 0.0
      %597 = vmatpush.msra.mxu0 0.0
      %598 = vmatpush.msra.mxu0 0.0
      %599 = vmatpush.msra.mxu0 0.0
      %600 = vmatpush.msra.mxu0 0.0
      %601 = vmatpush.msra.mxu0 0.0
      %602 = vmatpush.msra.mxu0 0.0
      %603 = vmatpush.msra.mxu0 0.0
      %604 = vmatpush.msra.mxu0 0.0
      %605 = vmatpush.msra.mxu0 0.0
      %606 = vmatpush.msra.mxu0 0.0
      %607 = vmatpush.msra.mxu0 0.0
      %608 = vmatpush.msra.mxu0 0.0
      %609 = vmatpush.msra.mxu0 0.0
      %610 = vmatpush.msra.mxu0 %v319
      %611 = vmatmul.f32.gmra.mxu0 %v531
      %v612 = vpop.f32.mrf.mxu0
      %v613 = vadd.f32 %v528, %v612
      %614 = vdwg.mxu0
      %v615 = vmax.f32 %v593, 0.0
      %v616 = vmax.f32 %v613, 0.0
      %s617 = scalar_lea.vmem %s4, 40
      %v618 = vld [vmem:[%s617] sm:$0xff]
      %s619 = scalar_lea.vmem %s4, 48
      %v620 = vld [vmem:[%s619] sm:$0xff]
      %v622 = vsel %vm323, %v620, 0
      %624 = vmatpush.msra.mxu0 0.0
      %625 = vmatpush.msra.mxu0 0.0
      %626 = vmatpush.msra.mxu0 0.0
      %627 = vmatpush.msra.mxu0 0.0
      %628 = vmatpush.msra.mxu0 0.0
      %629 = vmatpush.msra.mxu0 0.0
      %630 = vmatpush.msra.mxu0 0.0
      %631 = vmatpush.msra.mxu0 0.0
      %632 = vmatpush.msra.mxu0 0.0
      %633 = vmatpush.msra.mxu0 0.0
      %634 = vmatpush.msra.mxu0 0.0
      %635 = vmatpush.msra.mxu0 0.0
      %636 = vmatpush.msra.mxu0 0.0
      %637 = vmatpush.msra.mxu0 0.0
      %638 = vmatpush.msra.mxu0 0.0
      %639 = vmatpush.msra.mxu0 %v573
      %640 = vmatmul.f32.gmra.mxu0 %v622
      %v641 = vpop.f32.mrf.mxu0
      %v642 = vadd.f32 0.0, %v641
      %643 = vdwg.mxu0
      %644 = vmatpush.msra.mxu0 0.0
      %645 = vmatpush.msra.mxu0 0.0
      %646 = vmatpush.msra.mxu0 0.0
      %647 = vmatpush.msra.mxu0 0.0
      %648 = vmatpush.msra.mxu0 0.0
      %649 = vmatpush.msra.mxu0 0.0
      %650 = vmatpush.msra.mxu0 0.0
      %651 = vmatpush.msra.mxu0 0.0
      %652 = vmatpush.msra.mxu0 0.0
      %653 = vmatpush.msra.mxu0 0.0
      %654 = vmatpush.msra.mxu0 0.0
      %655 = vmatpush.msra.mxu0 0.0
      %656 = vmatpush.msra.mxu0 0.0
      %657 = vmatpush.msra.mxu0 0.0
      %658 = vmatpush.msra.mxu0 0.0
      %659 = vmatpush.msra.mxu0 %v574
      %660 = vmatmul.f32.gmra.mxu0 %v622
      %v661 = vpop.f32.mrf.mxu0
      %v662 = vadd.f32 0.0, %v661
      %663 = vdwg.mxu0
      %v665 = vsel %vm323, %v618, 0
      %667 = vmatpush.msra.mxu0 0.0
      %668 = vmatpush.msra.mxu0 0.0
      %669 = vmatpush.msra.mxu0 0.0
      %670 = vmatpush.msra.mxu0 0.0
      %671 = vmatpush.msra.mxu0 0.0
      %672 = vmatpush.msra.mxu0 0.0
      %673 = vmatpush.msra.mxu0 0.0
      %674 = vmatpush.msra.mxu0 0.0
      %675 = vmatpush.msra.mxu0 0.0
      %676 = vmatpush.msra.mxu0 0.0
      %677 = vmatpush.msra.mxu0 0.0
      %678 = vmatpush.msra.mxu0 0.0
      %679 = vmatpush.msra.mxu0 0.0
      %680 = vmatpush.msra.mxu0 0.0
      %681 = vmatpush.msra.mxu0 0.0
      %682 = vmatpush.msra.mxu0 %v519
      %683 = vmatmul.f32.gmra.mxu0 %v665
      %v684 = vpop.f32.mrf.mxu0
      %v685 = vadd.f32 %v642, %v684
      %686 = vdwg.mxu0
      %687 = vmatpush.msra.mxu0 0.0
      %688 = vmatpush.msra.mxu0 0.0
      %689 = vmatpush.msra.mxu0 0.0
      %690 = vmatpush.msra.mxu0 0.0
      %691 = vmatpush.msra.mxu0 0.0
      %692 = vmatpush.msra.mxu0 0.0
      %693 = vmatpush.msra.mxu0 0.0
      %694 = vmatpush.msra.mxu0 0.0
      %695 = vmatpush.msra.mxu0 0.0
      %696 = vmatpush.msra.mxu0 0.0
      %697 = vmatpush.msra.mxu0 0.0
      %698 = vmatpush.msra.mxu0 0.0
      %699 = vmatpush.msra.mxu0 0.0
      %700 = vmatpush.msra.mxu0 0.0
      %701 = vmatpush.msra.mxu0 0.0
      %702 = vmatpush.msra.mxu0 %v520
      %703 = vmatmul.f32.gmra.mxu0 %v665
      %v704 = vpop.f32.mrf.mxu0
      %v705 = vadd.f32 %v662, %v704
      %706 = vdwg.mxu0
      %s707 = scalar_lea.vmem %s4, 56
      %v708 = vld [vmem:[%s707] sm:$0xff]
      %v710 = vsel %vm323, %v708, 0
      %712 = vmatpush.msra.mxu0 0.0
      %713 = vmatpush.msra.mxu0 0.0
      %714 = vmatpush.msra.mxu0 0.0
      %715 = vmatpush.msra.mxu0 0.0
      %716 = vmatpush.msra.mxu0 0.0
      %717 = vmatpush.msra.mxu0 0.0
      %718 = vmatpush.msra.mxu0 0.0
      %719 = vmatpush.msra.mxu0 0.0
      %720 = vmatpush.msra.mxu0 0.0
      %721 = vmatpush.msra.mxu0 0.0
      %722 = vmatpush.msra.mxu0 0.0
      %723 = vmatpush.msra.mxu0 0.0
      %724 = vmatpush.msra.mxu0 0.0
      %725 = vmatpush.msra.mxu0 0.0
      %726 = vmatpush.msra.mxu0 0.0
      %727 = vmatpush.msra.mxu0 %v615
      %728 = vmatmul.f32.gmra.mxu0 %v710
      %v729 = vpop.f32.mrf.mxu0
      %v730 = vadd.f32 0.0, %v729
      %731 = vdwg.mxu0
      %732 = vmatpush.msra.mxu0 0.0
      %733 = vmatpush.msra.mxu0 0.0
      %734 = vmatpush.msra.mxu0 0.0
      %735 = vmatpush.msra.mxu0 0.0
      %736 = vmatpush.msra.mxu0 0.0
      %737 = vmatpush.msra.mxu0 0.0
      %738 = vmatpush.msra.mxu0 0.0
      %739 = vmatpush.msra.mxu0 0.0
      %740 = vmatpush.msra.mxu0 0.0
      %741 = vmatpush.msra.mxu0 0.0
      %742 = vmatpush.msra.mxu0 0.0
      %743 = vmatpush.msra.mxu0 0.0
      %744 = vmatpush.msra.mxu0 0.0
      %745 = vmatpush.msra.mxu0 0.0
      %746 = vmatpush.msra.mxu0 0.0
      %747 = vmatpush.msra.mxu0 %v616
      %748 = vmatmul.f32.gmra.mxu0 %v710
      %v749 = vpop.f32.mrf.mxu0
      %v750 = vadd.f32 0.0, %v749
      %751 = vdwg.mxu0
      %v752 = vadd.f32 %v685, %v730
      %v753 = vadd.f32 %v705, %v750
      %s754 = scalar_lea.vmem %s5, 24
      %v755 = vld [vmem:[%s754] sm:$0xff]
      %757 = vset.pattern.permute.xlu0 0
      %758 = vperm.xlu0 %757, %v755
      %v759 = vpop.permute.xlu0 %758
      %v761 = vadd.f32 %v752, %v759
      %v762 = vadd.f32 %v753, %v759
      %v763 = vmax.f32 %v761, 0.0
      %v764 = vmax.f32 %v762, 0.0
      %s765 = scalar_lea.vmem %s4, 64
      %v766 = vld [vmem:[%s765] sm:$0xff]
      %s767 = scalar_lea.vmem %s5, 32
      %v768 = vld [vmem:[%s767] sm:$0xff]
      %770 = vset.pattern.permute.xlu0 0
      %771 = vperm.xlu0 %770, %v768
      %v772 = vpop.permute.xlu0 %771
      %v775 = vsel %vm323, %v766, 0
      %777 = vmatpush.msra.mxu0 0.0
      %778 = vmatpush.msra.mxu0 0.0
      %779 = vmatpush.msra.mxu0 0.0
      %780 = vmatpush.msra.mxu0 0.0
      %781 = vmatpush.msra.mxu0 0.0
      %782 = vmatpush.msra.mxu0 0.0
      %783 = vmatpush.msra.mxu0 0.0
      %784 = vmatpush.msra.mxu0 0.0
      %785 = vmatpush.msra.mxu0 0.0
      %786 = vmatpush.msra.mxu0 0.0
      %787 = vmatpush.msra.mxu0 0.0
      %788 = vmatpush.msra.mxu0 0.0
      %789 = vmatpush.msra.mxu0 0.0
      %790 = vmatpush.msra.mxu0 0.0
      %791 = vmatpush.msra.mxu0 0.0
      %792 = vmatpush.msra.mxu0 %v763
      %793 = vmatmul.f32.gmra.mxu0 %v775
      %v794 = vpop.f32.mrf.mxu0
      %v795 = vadd.f32 %v772, %v794
      %796 = vdwg.mxu0
      %797 = vmatpush.msra.mxu0 0.0
      %798 = vmatpush.msra.mxu0 0.0
      %799 = vmatpush.msra.mxu0 0.0
      %800 = vmatpush.msra.mxu0 0.0
      %801 = vmatpush.msra.mxu0 0.0
      %802 = vmatpush.msra.mxu0 0.0
      %803 = vmatpush.msra.mxu0 0.0
      %804 = vmatpush.msra.mxu0 0.0
      %805 = vmatpush.msra.mxu0 0.0
      %806 = vmatpush.msra.mxu0 0.0
      %807 = vmatpush.msra.mxu0 0.0
      %808 = vmatpush.msra.mxu0 0.0
      %809 = vmatpush.msra.mxu0 0.0
      %810 = vmatpush.msra.mxu0 0.0
      %811 = vmatpush.msra.mxu0 0.0
      %812 = vmatpush.msra.mxu0 %v764
      %813 = vmatmul.f32.gmra.mxu0 %v775
      %v814 = vpop.f32.mrf.mxu0
      %v815 = vadd.f32 %v772, %v814
      %816 = vdwg.mxu0
      %v817 = vmax.f32 %v795, 0.0
      %v818 = vmax.f32 %v815, 0.0
      %v819 = vlaneseq
      %v820 = vand.u32 %v819, 127
      %v821 = vadd.s32 %v820, 128
      %vm822 = vcmp.lt.s32.totalorder %v820, 0
      %v823 = vsub.s32 0, %v820
      %v824 = vsel %vm822, %v823, %v820
      %v825 = vshrl.u32 %v824, 4
      %v826 = vand.u32 %v824, 15
      %v827 = vsub.s32 0, %v826
      %v828 = vsel %vm822, %v827, %v826
      %vm829 = vcmp.lt.s32.totalorder %v821, 0
      %v830 = vsub.s32 0, %v821
      %v831 = vsel %vm829, %v830, %v821
      %v832 = vshrl.u32 %v831, 4
      %v833 = vand.u32 %v831, 15
      %v834 = vsub.s32 0, %v833
      %v835 = vsel %vm829, %v834, %v833
      %vm836 = vcmp.ne.s32.totalorder %v828, 0
      %vm837 = vcmp.ne.s32.totalorder %v835, 0
      %vm838 = vcmp.lt.s32.totalorder %v828, 0
      %vm839 = vcmp.lt.s32.totalorder %v835, 0
      %vm840 = vmand %vm838, %vm836
      %vm841 = vmand %vm839, %vm837
      %v842 = vadd.s32 %v828, 16
      %v843 = vadd.s32 %v835, 16
      %v844 = vsel %vm840, %v842, %v828
      %v845 = vsel %vm841, %v843, %v835
      %vm846 = vcmp.ge.s32.totalorder %v844, 1
      %vm847 = vcmp.ge.s32.totalorder %v845, 1
      %vm848 = vcmp.le.s32.totalorder %v844, 14
      %vm849 = vcmp.le.s32.totalorder %v845, 14
      %852 = vrot.lane.b32.xlu0 %v817, 17
      %v853 = vpop.permute.xlu0 %852
      %854 = vrot.lane.b32.xlu0 %v818, 17
      %v855 = vpop.permute.xlu0 %854
      %vm856 = vcmask 138240
      %v857 = vsel %vm856, %v853, %v855
      %v860 = vsel %vm856, 0.0, %v853
      %v861 = vsel %vm846, 1, 0
      %v862 = vsel %vm847, 1, 0
      %vm863 = vcmp.eq.s32.totalorder %v861, 1
      %vm864 = vcmp.eq.s32.totalorder %v862, 1
      %v865 = vsel %vm863, %v860, 0.0
      %v866 = vsel %vm864, %v857, 0.0
      %s867 = scalar_lea.vmem %s4, 72
      %v868 = vld [vmem:[%s867] sm:$0xff]
      %869 = vrot.lane.b32.xlu0 %v817, 16
      %v870 = vpop.permute.xlu0 %869
      %871 = vrot.lane.b32.xlu0 %v818, 16
      %v872 = vpop.permute.xlu0 %871
      %vm873 = vcmask 130048
      %v874 = vsel %vm873, %v870, %v872
      %v877 = vsel %vm873, 0.0, %v870
      %s878 = scalar_lea.vmem %s4, 80
      %v879 = vld [vmem:[%s878] sm:$0xff]
      %v881 = vsel %vm323, %v879, 0
      %883 = vmatpush.msra.mxu0 0.0
      %884 = vmatpush.msra.mxu0 0.0
      %885 = vmatpush.msra.mxu0 0.0
      %886 = vmatpush.msra.mxu0 0.0
      %887 = vmatpush.msra.mxu0 0.0
      %888 = vmatpush.msra.mxu0 0.0
      %889 = vmatpush.msra.mxu0 0.0
      %890 = vmatpush.msra.mxu0 0.0
      %891 = vmatpush.msra.mxu0 0.0
      %892 = vmatpush.msra.mxu0 0.0
      %893 = vmatpush.msra.mxu0 0.0
      %894 = vmatpush.msra.mxu0 0.0
      %895 = vmatpush.msra.mxu0 0.0
      %896 = vmatpush.msra.mxu0 0.0
      %897 = vmatpush.msra.mxu0 0.0
      %898 = vmatpush.msra.mxu0 %v877
      %899 = vmatmul.f32.gmra.mxu0 %v881
      %v900 = vpop.f32.mrf.mxu0
      %v901 = vadd.f32 0.0, %v900
      %902 = vdwg.mxu0
      %903 = vmatpush.msra.mxu0 0.0
      %904 = vmatpush.msra.mxu0 0.0
      %905 = vmatpush.msra.mxu0 0.0
      %906 = vmatpush.msra.mxu0 0.0
      %907 = vmatpush.msra.mxu0 0.0
      %908 = vmatpush.msra.mxu0 0.0
      %909 = vmatpush.msra.mxu0 0.0
      %910 = vmatpush.msra.mxu0 0.0
      %911 = vmatpush.msra.mxu0 0.0
      %912 = vmatpush.msra.mxu0 0.0
      %913 = vmatpush.msra.mxu0 0.0
      %914 = vmatpush.msra.mxu0 0.0
      %915 = vmatpush.msra.mxu0 0.0
      %916 = vmatpush.msra.mxu0 0.0
      %917 = vmatpush.msra.mxu0 0.0
      %918 = vmatpush.msra.mxu0 %v874
      %919 = vmatmul.f32.gmra.mxu0 %v881
      %v920 = vpop.f32.mrf.mxu0
      %v921 = vadd.f32 0.0, %v920
      %922 = vdwg.mxu0
      %v924 = vsel %vm323, %v868, 0
      %926 = vmatpush.msra.mxu0 0.0
      %927 = vmatpush.msra.mxu0 0.0
      %928 = vmatpush.msra.mxu0 0.0
      %929 = vmatpush.msra.mxu0 0.0
      %930 = vmatpush.msra.mxu0 0.0
      %931 = vmatpush.msra.mxu0 0.0
      %932 = vmatpush.msra.mxu0 0.0
      %933 = vmatpush.msra.mxu0 0.0
      %934 = vmatpush.msra.mxu0 0.0
      %935 = vmatpush.msra.mxu0 0.0
      %936 = vmatpush.msra.mxu0 0.0
      %937 = vmatpush.msra.mxu0 0.0
      %938 = vmatpush.msra.mxu0 0.0
      %939 = vmatpush.msra.mxu0 0.0
      %940 = vmatpush.msra.mxu0 0.0
      %941 = vmatpush.msra.mxu0 %v865
      %942 = vmatmul.f32.gmra.mxu0 %v924
      %v943 = vpop.f32.mrf.mxu0
      %v944 = vadd.f32 %v901, %v943
      %945 = vdwg.mxu0
      %946 = vmatpush.msra.mxu0 0.0
      %947 = vmatpush.msra.mxu0 0.0
      %948 = vmatpush.msra.mxu0 0.0
      %949 = vmatpush.msra.mxu0 0.0
      %950 = vmatpush.msra.mxu0 0.0
      %951 = vmatpush.msra.mxu0 0.0
      %952 = vmatpush.msra.mxu0 0.0
      %953 = vmatpush.msra.mxu0 0.0
      %954 = vmatpush.msra.mxu0 0.0
      %955 = vmatpush.msra.mxu0 0.0
      %956 = vmatpush.msra.mxu0 0.0
      %957 = vmatpush.msra.mxu0 0.0
      %958 = vmatpush.msra.mxu0 0.0
      %959 = vmatpush.msra.mxu0 0.0
      %960 = vmatpush.msra.mxu0 0.0
      %961 = vmatpush.msra.mxu0 %v866
      %962 = vmatmul.f32.gmra.mxu0 %v924
      %v963 = vpop.f32.mrf.mxu0
      %v964 = vadd.f32 %v921, %v963
      %965 = vdwg.mxu0
      %966 = vrot.lane.b32.xlu0 %v817, 15
      %v967 = vpop.permute.xlu0 %966
      %968 = vrot.lane.b32.xlu0 %v818, 15
      %v969 = vpop.permute.xlu0 %968
      %vm970 = vcmask 121856
      %v971 = vsel %vm970, %v967, %v969
      %v974 = vsel %vm970, 0.0, %v967
      %v975 = vsel %vm848, 1, 0
      %v976 = vsel %vm849, 1, 0
      %vm977 = vcmp.eq.s32.totalorder %v975, 1
      %vm978 = vcmp.eq.s32.totalorder %v976, 1
      %v979 = vsel %vm977, %v974, 0.0
      %v980 = vsel %vm978, %v971, 0.0
      %s981 = scalar_lea.vmem %s4, 88
      %v982 = vld [vmem:[%s981] sm:$0xff]
      %v984 = vsel %vm323, %v982, 0
      %986 = vmatpush.msra.mxu0 0.0
      %987 = vmatpush.msra.mxu0 0.0
      %988 = vmatpush.msra.mxu0 0.0
      %989 = vmatpush.msra.mxu0 0.0
      %990 = vmatpush.msra.mxu0 0.0
      %991 = vmatpush.msra.mxu0 0.0
      %992 = vmatpush.msra.mxu0 0.0
      %993 = vmatpush.msra.mxu0 0.0
      %994 = vmatpush.msra.mxu0 0.0
      %995 = vmatpush.msra.mxu0 0.0
      %996 = vmatpush.msra.mxu0 0.0
      %997 = vmatpush.msra.mxu0 0.0
      %998 = vmatpush.msra.mxu0 0.0
      %999 = vmatpush.msra.mxu0 0.0
      %1000 = vmatpush.msra.mxu0 0.0
      %1001 = vmatpush.msra.mxu0 %v979
      %1002 = vmatmul.f32.gmra.mxu0 %v984
      %v1003 = vpop.f32.mrf.mxu0
      %v1004 = vadd.f32 0.0, %v1003
      %1005 = vdwg.mxu0
      %1006 = vmatpush.msra.mxu0 0.0
      %1007 = vmatpush.msra.mxu0 0.0
      %1008 = vmatpush.msra.mxu0 0.0
      %1009 = vmatpush.msra.mxu0 0.0
      %1010 = vmatpush.msra.mxu0 0.0
      %1011 = vmatpush.msra.mxu0 0.0
      %1012 = vmatpush.msra.mxu0 0.0
      %1013 = vmatpush.msra.mxu0 0.0
      %1014 = vmatpush.msra.mxu0 0.0
      %1015 = vmatpush.msra.mxu0 0.0
      %1016 = vmatpush.msra.mxu0 0.0
      %1017 = vmatpush.msra.mxu0 0.0
      %1018 = vmatpush.msra.mxu0 0.0
      %1019 = vmatpush.msra.mxu0 0.0
      %1020 = vmatpush.msra.mxu0 0.0
      %1021 = vmatpush.msra.mxu0 %v980
      %1022 = vmatmul.f32.gmra.mxu0 %v984
      %v1023 = vpop.f32.mrf.mxu0
      %v1024 = vadd.f32 0.0, %v1023
      %1025 = vdwg.mxu0
      %v1026 = vadd.f32 %v944, %v1004
      %v1027 = vadd.f32 %v964, %v1024
      %1028 = vrot.lane.b32.xlu0 %v817, 1
      %v1029 = vpop.permute.xlu0 %1028
      %1030 = vrot.lane.b32.xlu0 %v818, 1
      %v1031 = vpop.permute.xlu0 %1030
      %vm1032 = vcmask 7168
      %v1033 = vsel %vm1032, %v1029, %v1031
      %v1036 = vsel %vm1032, 0.0, %v1029
      %v1037 = vsel %vm863, %v1036, 0.0
      %v1038 = vsel %vm864, %v1033, 0.0
      %s1039 = scalar_lea.vmem %s4, 96
      %v1040 = vld [vmem:[%s1039] sm:$0xff]
      %v1042 = vsel %vm323, %v1040, 0
      %1044 = vmatpush.msra.mxu0 0.0
      %1045 = vmatpush.msra.mxu0 0.0
      %1046 = vmatpush.msra.mxu0 0.0
      %1047 = vmatpush.msra.mxu0 0.0
      %1048 = vmatpush.msra.mxu0 0.0
      %1049 = vmatpush.msra.mxu0 0.0
      %1050 = vmatpush.msra.mxu0 0.0
      %1051 = vmatpush.msra.mxu0 0.0
      %1052 = vmatpush.msra.mxu0 0.0
      %1053 = vmatpush.msra.mxu0 0.0
      %1054 = vmatpush.msra.mxu0 0.0
      %1055 = vmatpush.msra.mxu0 0.0
      %1056 = vmatpush.msra.mxu0 0.0
      %1057 = vmatpush.msra.mxu0 0.0
      %1058 = vmatpush.msra.mxu0 0.0
      %1059 = vmatpush.msra.mxu0 %v1037
      %1060 = vmatmul.f32.gmra.mxu0 %v1042
      %v1061 = vpop.f32.mrf.mxu0
      %v1062 = vadd.f32 0.0, %v1061
      %1063 = vdwg.mxu0
      %1064 = vmatpush.msra.mxu0 0.0
      %1065 = vmatpush.msra.mxu0 0.0
      %1066 = vmatpush.msra.mxu0 0.0
      %1067 = vmatpush.msra.mxu0 0.0
      %1068 = vmatpush.msra.mxu0 0.0
      %1069 = vmatpush.msra.mxu0 0.0
      %1070 = vmatpush.msra.mxu0 0.0
      %1071 = vmatpush.msra.mxu0 0.0
      %1072 = vmatpush.msra.mxu0 0.0
      %1073 = vmatpush.msra.mxu0 0.0
      %1074 = vmatpush.msra.mxu0 0.0
      %1075 = vmatpush.msra.mxu0 0.0
      %1076 = vmatpush.msra.mxu0 0.0
      %1077 = vmatpush.msra.mxu0 0.0
      %1078 = vmatpush.msra.mxu0 0.0
      %1079 = vmatpush.msra.mxu0 %v1038
      %1080 = vmatmul.f32.gmra.mxu0 %v1042
      %v1081 = vpop.f32.mrf.mxu0
      %v1082 = vadd.f32 0.0, %v1081
      %1083 = vdwg.mxu0
      %v1084 = vadd.f32 %v1026, %v1062
      %v1085 = vadd.f32 %v1027, %v1082
      %s1086 = scalar_lea.vmem %s4, 104
      %v1087 = vld [vmem:[%s1086] sm:$0xff]
      %v1089 = vsel %vm323, %v1087, 0
      %1091 = vmatpush.msra.mxu0 0.0
      %1092 = vmatpush.msra.mxu0 0.0
      %1093 = vmatpush.msra.mxu0 0.0
      %1094 = vmatpush.msra.mxu0 0.0
      %1095 = vmatpush.msra.mxu0 0.0
      %1096 = vmatpush.msra.mxu0 0.0
      %1097 = vmatpush.msra.mxu0 0.0
      %1098 = vmatpush.msra.mxu0 0.0
      %1099 = vmatpush.msra.mxu0 0.0
      %1100 = vmatpush.msra.mxu0 0.0
      %1101 = vmatpush.msra.mxu0 0.0
      %1102 = vmatpush.msra.mxu0 0.0
      %1103 = vmatpush.msra.mxu0 0.0
      %1104 = vmatpush.msra.mxu0 0.0
      %1105 = vmatpush.msra.mxu0 0.0
      %1106 = vmatpush.msra.mxu0 %v817
      %1107 = vmatmul.f32.gmra.mxu0 %v1089
      %v1108 = vpop.f32.mrf.mxu0
      %v1109 = vadd.f32 0.0, %v1108
      %1110 = vdwg.mxu0
      %1111 = vmatpush.msra.mxu0 0.0
      %1112 = vmatpush.msra.mxu0 0.0
      %1113 = vmatpush.msra.mxu0 0.0
      %1114 = vmatpush.msra.mxu0 0.0
      %1115 = vmatpush.msra.mxu0 0.0
      %1116 = vmatpush.msra.mxu0 0.0
      %1117 = vmatpush.msra.mxu0 0.0
      %1118 = vmatpush.msra.mxu0 0.0
      %1119 = vmatpush.msra.mxu0 0.0
      %1120 = vmatpush.msra.mxu0 0.0
      %1121 = vmatpush.msra.mxu0 0.0
      %1122 = vmatpush.msra.mxu0 0.0
      %1123 = vmatpush.msra.mxu0 0.0
      %1124 = vmatpush.msra.mxu0 0.0
      %1125 = vmatpush.msra.mxu0 0.0
      %1126 = vmatpush.msra.mxu0 %v818
      %1127 = vmatmul.f32.gmra.mxu0 %v1089
      %v1128 = vpop.f32.mrf.mxu0
      %v1129 = vadd.f32 0.0, %v1128
      %1130 = vdwg.mxu0
      %v1131 = vadd.f32 %v1084, %v1109
      %v1132 = vadd.f32 %v1085, %v1129
      %1133 = vrot.lane.b32.xlu0 %v817, 127
      %v1134 = vpop.permute.xlu0 %1133
      %1135 = vrot.lane.b32.xlu0 %v818, 127
      %v1136 = vpop.permute.xlu0 %1135
      %vm1137 = vcmask 1039360
      %v1138 = vsel %vm1137, %v1134, %v1136
      %v1141 = vsel %vm1137, %v1136, 0.0
      %v1142 = vsel %vm977, %v1138, 0.0
      %v1143 = vsel %vm978, %v1141, 0.0
      %s1144 = scalar_lea.vmem %s4, 112
      %v1145 = vld [vmem:[%s1144] sm:$0xff]
      %v1147 = vsel %vm323, %v1145, 0
      %1149 = vmatpush.msra.mxu0 0.0
      %1150 = vmatpush.msra.mxu0 0.0
      %1151 = vmatpush.msra.mxu0 0.0
      %1152 = vmatpush.msra.mxu0 0.0
      %1153 = vmatpush.msra.mxu0 0.0
      %1154 = vmatpush.msra.mxu0 0.0
      %1155 = vmatpush.msra.mxu0 0.0
      %1156 = vmatpush.msra.mxu0 0.0
      %1157 = vmatpush.msra.mxu0 0.0
      %1158 = vmatpush.msra.mxu0 0.0
      %1159 = vmatpush.msra.mxu0 0.0
      %1160 = vmatpush.msra.mxu0 0.0
      %1161 = vmatpush.msra.mxu0 0.0
      %1162 = vmatpush.msra.mxu0 0.0
      %1163 = vmatpush.msra.mxu0 0.0
      %1164 = vmatpush.msra.mxu0 %v1142
      %1165 = vmatmul.f32.gmra.mxu0 %v1147
      %v1166 = vpop.f32.mrf.mxu0
      %v1167 = vadd.f32 0.0, %v1166
      %1168 = vdwg.mxu0
      %1169 = vmatpush.msra.mxu0 0.0
      %1170 = vmatpush.msra.mxu0 0.0
      %1171 = vmatpush.msra.mxu0 0.0
      %1172 = vmatpush.msra.mxu0 0.0
      %1173 = vmatpush.msra.mxu0 0.0
      %1174 = vmatpush.msra.mxu0 0.0
      %1175 = vmatpush.msra.mxu0 0.0
      %1176 = vmatpush.msra.mxu0 0.0
      %1177 = vmatpush.msra.mxu0 0.0
      %1178 = vmatpush.msra.mxu0 0.0
      %1179 = vmatpush.msra.mxu0 0.0
      %1180 = vmatpush.msra.mxu0 0.0
      %1181 = vmatpush.msra.mxu0 0.0
      %1182 = vmatpush.msra.mxu0 0.0
      %1183 = vmatpush.msra.mxu0 0.0
      %1184 = vmatpush.msra.mxu0 %v1143
      %1185 = vmatmul.f32.gmra.mxu0 %v1147
      %v1186 = vpop.f32.mrf.mxu0
      %v1187 = vadd.f32 0.0, %v1186
      %1188 = vdwg.mxu0
      %v1189 = vadd.f32 %v1131, %v1167
      %v1190 = vadd.f32 %v1132, %v1187
      %1191 = vrot.lane.b32.xlu0 %v817, 113
      %v1192 = vpop.permute.xlu0 %1191
      %1193 = vrot.lane.b32.xlu0 %v818, 113
      %v1194 = vpop.permute.xlu0 %1193
      %vm1195 = vcmask 924672
      %v1196 = vsel %vm1195, %v1192, %v1194
      %v1199 = vsel %vm1195, %v1194, 0.0
      %v1200 = vsel %vm863, %v1196, 0.0
      %v1201 = vsel %vm864, %v1199, 0.0
      %s1202 = scalar_lea.vmem %s4, 120
      %v1203 = vld [vmem:[%s1202] sm:$0xff]
      %v1205 = vsel %vm323, %v1203, 0
      %1207 = vmatpush.msra.mxu0 0.0
      %1208 = vmatpush.msra.mxu0 0.0
      %1209 = vmatpush.msra.mxu0 0.0
      %1210 = vmatpush.msra.mxu0 0.0
      %1211 = vmatpush.msra.mxu0 0.0
      %1212 = vmatpush.msra.mxu0 0.0
      %1213 = vmatpush.msra.mxu0 0.0
      %1214 = vmatpush.msra.mxu0 0.0
      %1215 = vmatpush.msra.mxu0 0.0
      %1216 = vmatpush.msra.mxu0 0.0
      %1217 = vmatpush.msra.mxu0 0.0
      %1218 = vmatpush.msra.mxu0 0.0
      %1219 = vmatpush.msra.mxu0 0.0
      %1220 = vmatpush.msra.mxu0 0.0
      %1221 = vmatpush.msra.mxu0 0.0
      %1222 = vmatpush.msra.mxu0 %v1200
      %1223 = vmatmul.f32.gmra.mxu0 %v1205
      %v1224 = vpop.f32.mrf.mxu0
      %v1225 = vadd.f32 0.0, %v1224
      %1226 = vdwg.mxu0
      %1227 = vmatpush.msra.mxu0 0.0
      %1228 = vmatpush.msra.mxu0 0.0
      %1229 = vmatpush.msra.mxu0 0.0
      %1230 = vmatpush.msra.mxu0 0.0
      %1231 = vmatpush.msra.mxu0 0.0
      %1232 = vmatpush.msra.mxu0 0.0
      %1233 = vmatpush.msra.mxu0 0.0
      %1234 = vmatpush.msra.mxu0 0.0
      %1235 = vmatpush.msra.mxu0 0.0
      %1236 = vmatpush.msra.mxu0 0.0
      %1237 = vmatpush.msra.mxu0 0.0
      %1238 = vmatpush.msra.mxu0 0.0
      %1239 = vmatpush.msra.mxu0 0.0
      %1240 = vmatpush.msra.mxu0 0.0
      %1241 = vmatpush.msra.mxu0 0.0
      %1242 = vmatpush.msra.mxu0 %v1201
      %1243 = vmatmul.f32.gmra.mxu0 %v1205
      %v1244 = vpop.f32.mrf.mxu0
      %v1245 = vadd.f32 0.0, %v1244
      %1246 = vdwg.mxu0
      %v1247 = vadd.f32 %v1189, %v1225
      %v1248 = vadd.f32 %v1190, %v1245
      %1249 = vrot.lane.b32.xlu0 %v817, 112
      %v1250 = vpop.permute.xlu0 %1249
      %1251 = vrot.lane.b32.xlu0 %v818, 112
      %v1252 = vpop.permute.xlu0 %1251
      %vm1253 = vcmask 916480
      %v1254 = vsel %vm1253, %v1250, %v1252
      %v1257 = vsel %vm1253, %v1252, 0.0
      %s1258 = scalar_lea.vmem %s4, 128
      %v1259 = vld [vmem:[%s1258] sm:$0xff]
      %v1261 = vsel %vm323, %v1259, 0
      %1263 = vmatpush.msra.mxu0 0.0
      %1264 = vmatpush.msra.mxu0 0.0
      %1265 = vmatpush.msra.mxu0 0.0
      %1266 = vmatpush.msra.mxu0 0.0
      %1267 = vmatpush.msra.mxu0 0.0
      %1268 = vmatpush.msra.mxu0 0.0
      %1269 = vmatpush.msra.mxu0 0.0
      %1270 = vmatpush.msra.mxu0 0.0
      %1271 = vmatpush.msra.mxu0 0.0
      %1272 = vmatpush.msra.mxu0 0.0
      %1273 = vmatpush.msra.mxu0 0.0
      %1274 = vmatpush.msra.mxu0 0.0
      %1275 = vmatpush.msra.mxu0 0.0
      %1276 = vmatpush.msra.mxu0 0.0
      %1277 = vmatpush.msra.mxu0 0.0
      %1278 = vmatpush.msra.mxu0 %v1254
      %1279 = vmatmul.f32.gmra.mxu0 %v1261
      %v1280 = vpop.f32.mrf.mxu0
      %v1281 = vadd.f32 0.0, %v1280
      %1282 = vdwg.mxu0
      %1283 = vmatpush.msra.mxu0 0.0
      %1284 = vmatpush.msra.mxu0 0.0
      %1285 = vmatpush.msra.mxu0 0.0
      %1286 = vmatpush.msra.mxu0 0.0
      %1287 = vmatpush.msra.mxu0 0.0
      %1288 = vmatpush.msra.mxu0 0.0
      %1289 = vmatpush.msra.mxu0 0.0
      %1290 = vmatpush.msra.mxu0 0.0
      %1291 = vmatpush.msra.mxu0 0.0
      %1292 = vmatpush.msra.mxu0 0.0
      %1293 = vmatpush.msra.mxu0 0.0
      %1294 = vmatpush.msra.mxu0 0.0
      %1295 = vmatpush.msra.mxu0 0.0
      %1296 = vmatpush.msra.mxu0 0.0
      %1297 = vmatpush.msra.mxu0 0.0
      %1298 = vmatpush.msra.mxu0 %v1257
      %1299 = vmatmul.f32.gmra.mxu0 %v1261
      %v1300 = vpop.f32.mrf.mxu0
      %v1301 = vadd.f32 0.0, %v1300
      %1302 = vdwg.mxu0
      %v1303 = vadd.f32 %v1247, %v1281
      %v1304 = vadd.f32 %v1248, %v1301
      %1305 = vrot.lane.b32.xlu0 %v817, 111
      %v1306 = vpop.permute.xlu0 %1305
      %1307 = vrot.lane.b32.xlu0 %v818, 111
      %v1308 = vpop.permute.xlu0 %1307
      %vm1309 = vcmask 908288
      %v1310 = vsel %vm1309, %v1306, %v1308
      %v1313 = vsel %vm1309, %v1308, 0.0
      %v1314 = vsel %vm977, %v1310, 0.0
      %v1315 = vsel %vm978, %v1313, 0.0
      %s1316 = scalar_lea.vmem %s4, 136
      %v1317 = vld [vmem:[%s1316] sm:$0xff]
      %v1319 = vsel %vm323, %v1317, 0
      %1321 = vmatpush.msra.mxu0 0.0
      %1322 = vmatpush.msra.mxu0 0.0
      %1323 = vmatpush.msra.mxu0 0.0
      %1324 = vmatpush.msra.mxu0 0.0
      %1325 = vmatpush.msra.mxu0 0.0
      %1326 = vmatpush.msra.mxu0 0.0
      %1327 = vmatpush.msra.mxu0 0.0
      %1328 = vmatpush.msra.mxu0 0.0
      %1329 = vmatpush.msra.mxu0 0.0
      %1330 = vmatpush.msra.mxu0 0.0
      %1331 = vmatpush.msra.mxu0 0.0
      %1332 = vmatpush.msra.mxu0 0.0
      %1333 = vmatpush.msra.mxu0 0.0
      %1334 = vmatpush.msra.mxu0 0.0
      %1335 = vmatpush.msra.mxu0 0.0
      %1336 = vmatpush.msra.mxu0 %v1314
      %1337 = vmatmul.f32.gmra.mxu0 %v1319
      %v1338 = vpop.f32.mrf.mxu0
      %v1339 = vadd.f32 0.0, %v1338
      %1340 = vdwg.mxu0
      %1341 = vmatpush.msra.mxu0 0.0
      %1342 = vmatpush.msra.mxu0 0.0
      %1343 = vmatpush.msra.mxu0 0.0
      %1344 = vmatpush.msra.mxu0 0.0
      %1345 = vmatpush.msra.mxu0 0.0
      %1346 = vmatpush.msra.mxu0 0.0
      %1347 = vmatpush.msra.mxu0 0.0
      %1348 = vmatpush.msra.mxu0 0.0
      %1349 = vmatpush.msra.mxu0 0.0
      %1350 = vmatpush.msra.mxu0 0.0
      %1351 = vmatpush.msra.mxu0 0.0
      %1352 = vmatpush.msra.mxu0 0.0
      %1353 = vmatpush.msra.mxu0 0.0
      %1354 = vmatpush.msra.mxu0 0.0
      %1355 = vmatpush.msra.mxu0 0.0
      %1356 = vmatpush.msra.mxu0 %v1315
      %1357 = vmatmul.f32.gmra.mxu0 %v1319
      %v1358 = vpop.f32.mrf.mxu0
      %v1359 = vadd.f32 0.0, %v1358
      %1360 = vdwg.mxu0
      %v1361 = vadd.f32 %v1303, %v1339
      %v1362 = vadd.f32 %v1304, %v1359
      %s1363 = scalar_lea.vmem %s5, 40
      %v1364 = vld [vmem:[%s1363] sm:$0xff]
      %1366 = vset.pattern.permute.xlu0 0
      %1367 = vperm.xlu0 %1366, %v1364
      %v1368 = vpop.permute.xlu0 %1367
      %v1370 = vadd.f32 %v1361, %v1368
      %v1371 = vadd.f32 %v1362, %v1368
      %v1372 = vmax.f32 %v1370, 0.0
      %v1373 = vmax.f32 %v1371, 0.0
      %v1374 = vadd.f32 %v1372, %v418
      %v1375 = vadd.f32 %v1373, %v419
      %1376 = vst [vmem:[%s311] sm:$0xff] %v1374
      %1377 = vst [vmem:[%s311 + $0x8] sm:$0xff] %v1375
      %p1378 = scmp.lt.s32.totalorder %s17, 1
      %s1379 = scalar_select %p1378, %s17, 1
      %s1380 = smul.addr %s1379, 2
      %s1381 = smul.addr %s1380, 8
      %s1382 = scalar_lea.vmem %s6, %s1381
      // Predicated region
      $region45: #{bcif_forward.1} parent=43 // pred_check
        %p1383 = pneg %p181
      $region46: #{bcif_forward.1} parent=43 // pred_check_branch
        %1385 = sbr.rel (%p1383) target = $region48
      $region47: #{bcif_forward.1} parent=43 // pred_region
        _
      $region48: #{bcif_forward.1} parent=43 // pred_fallthru
        _
    $region44: #{bcif_forward.1} parent=5 // pred_fallthru
      _
    %p1386 = scmp.le.s32.totalorder 2, %s12
    // Predicated region
    $region49: #{bcif_forward.1} parent=5 // pred_check
      %p1387 = pneg %p1386
    $region50: #{bcif_forward.1} parent=5 // pred_check_branch
      %1389 = sbr.rel (%p1387) target = $region52
    $region51: #{bcif_forward.1} parent=5 // pred_region
      %s1390 = ssub.s32 %s12, 2
      // Predicated region
      $region53: #{bcif_forward.1} parent=51 // pred_check
        %p1391 = pneg %p187
      $region54: #{bcif_forward.1} parent=51 // pred_check_branch
        %1393 = sbr.rel (%p1391) target = $region56
      $region55: #{bcif_forward.1} parent=51 // pred_region
        %p1394 = scmp.lt.s32.totalorder %s18, 1
        %s1395 = scalar_select %p1394, %s18, 1
        %s1396 = smul.addr %s1395, 2
        %s1397 = smul.addr %s1396, 8
        %s1398 = scalar_lea.vmem %s6, %s1397
      $region56: #{bcif_forward.1} parent=51 // pred_fallthru
        _
    $region52: #{bcif_forward.1} parent=5 // pred_fallthru
      _
  $region6: #{bcif_forward.1} parent=0 // loop_footer
    %s16 = sadd.s32 1, %s12
  $region7: #{bcif_forward.1} parent=0 // loop_footer_branch
    %11 = sbr.rel target = $region3
  $region8: #{bcif_forward.1} parent=0 // loop_exit
    _

</llo_original>
